<compile_context>
chip_gen: v7x
topology: tpu7x:2x2x1
jax: 0.10.0
libtpu: 0.0.40
codegen_flags: <defaults>
</compile_context>

<pallas_src>
import jax
import jax.numpy as jnp
from jax.experimental import pallas as pl
from jax.experimental.pallas import tpu as pltpu
from functools import partial


def _decoder_kernel(qx_ref, kx_ref, vx_ref, wt_ref, b_ref, o_ref, *,
                    n_heads, d_model):
    # Block shapes:
    #   qx/kx/vx/o : (1, S, D)
    #   wt         : (3, D, D)  -- wt[0] = (W_q.T * scale), wt[1] = W_k.T, wt[2] = W_v.T
    #   b          : (3, D)     -- b[0]  = b_q * scale,     b[1]  = b_k,    b[2]  = b_v
    S = qx_ref.shape[1]
    Dh = d_model // n_heads

    qx = qx_ref[0]          # (S, D)
    kx = kx_ref[0]          # (S, D)
    vx = vx_ref[0]          # (S, D)

    b = b_ref[...]          # (3, D)

    # Linear projections: y = x @ W.T + b (weights already transposed on host,
    # attention scale pre-folded into the Q weight/bias).
    q = jnp.dot(qx, wt_ref[0], preferred_element_type=jnp.float32) + b[0:1]
    k = jnp.dot(kx, wt_ref[1], preferred_element_type=jnp.float32) + b[1:2]
    v = jnp.dot(vx, wt_ref[2], preferred_element_type=jnp.float32) + b[2:3]

    # Split heads: (S, D) -> (H, S, Dh); one batched matmul over all heads.
    def split_heads(x):
        return x.reshape(S, n_heads, Dh).transpose(1, 0, 2)

    qh = split_heads(q)             # scale is already folded into q
    kh = split_heads(k)
    vh = split_heads(v)

    # Scores for all heads at once: (H, S, S)
    s = jnp.einsum('hqd,hkd->hqk', qh, kh,
                   preferred_element_type=jnp.float32)

    # Numerically stable softmax, kept in f32.
    m = jnp.max(s, axis=-1, keepdims=True)
    e = jnp.exp(s - m)
    denom = jnp.sum(e, axis=-1, keepdims=True)
    p = e * pl.reciprocal(denom, approx=False)  # exact, to hold 1e-4 tolerance

    # Context for all heads at once: (H, S, Dh)
    ctx = jnp.einsum('hqk,hkd->hqd', p, vh,
                     preferred_element_type=jnp.float32)

    # Merge heads and do a single lane-dense (S, D) store.
    out = ctx.transpose(1, 0, 2).reshape(S, d_model)
    o_ref[0] = out.astype(o_ref.dtype)


def decoder_forward(qx, kx, vx, params, *, n_heads):
    B, S, D = qx.shape
    wq, bq, wk, bk, wv, bv = params
    scale = 1.0 / (D ** 0.5)  # PyTorch module scales scores by 1/sqrt(d_model)

    # Host-side layout plumbing: pre-transpose and stack the three projections
    # (folding the attention scale into the Q projection) so the kernel never
    # transposes and only pulls 2 parameter tensors.
    wt = jnp.stack([wq.T * scale, wk.T, wv.T], axis=0)   # (3, D, D)
    b = jnp.stack([bq * scale, bk, bv], axis=0)          # (3, D)

    kernel = partial(_decoder_kernel, n_heads=n_heads, d_model=D)

    seq_spec = pl.BlockSpec((1, S, D), lambda bi: (bi, 0, 0))
    wt_spec = pl.BlockSpec((3, D, D), lambda bi: (0, 0, 0))
    b_spec = pl.BlockSpec((3, D), lambda bi: (0, 0))

    return pl.pallas_call(
        kernel,
        out_shape=jax.ShapeDtypeStruct((B, S, D), jnp.float32),
        grid_spec=pltpu.PrefetchScalarGridSpec(
            num_scalar_prefetch=0,
            grid=(B,),
            in_specs=[seq_spec, seq_spec, seq_spec, wt_spec, b_spec],
            out_specs=seq_spec,
        ),
        compiler_params=pltpu.CompilerParams(
            dimension_semantics=("parallel",)),
    )(qx, kx, vx, wt, b)


def _reference(qx, kx, vx, params, n_heads):
    # Plain-JAX reference mirroring the PyTorch forward (mask=None).
    wq, bq, wk, bk, wv, bv = params
    B, S, D = qx.shape
    Dh = D // n_heads
    q = qx @ wq.T + bq
    k = kx @ wk.T + bk
    v = vx @ wv.T + bv
    q = q.reshape(B, S, n_heads, Dh).transpose(0, 2, 1, 3)
    k = k.reshape(B, S, n_heads, Dh).transpose(0, 2, 1, 3)
    v = v.reshape(B, S, n_heads, Dh).transpose(0, 2, 1, 3)
    attn = jnp.einsum("bhqd,bhkd->bhqk", q, k) / (D ** 0.5)
    attn = jax.nn.softmax(attn, axis=-1)
    out = jnp.einsum("bhqk,bhkd->bhqd", attn, v)
    return out.transpose(0, 2, 1, 3).reshape(B, S, D)


if __name__ == "__main__":
    B, S, D, H = 2, 8, 32, 4

    key = jax.random.PRNGKey(0)
    kqx, kkx, kvx, kwq, kbq, kwk, kbk, kwv, kbv = jax.random.split(key, 9)

    qx = jax.random.normal(kqx, (B, S, D), dtype=jnp.float32)
    kx = jax.random.normal(kkx, (B, S, D), dtype=jnp.float32)
    vx = jax.random.normal(kvx, (B, S, D), dtype=jnp.float32)

    # Deterministic parameter init, shapes per nn.Linear(d_model, d_model).
    bound = 1.0 / (D ** 0.5)
    wq = jax.random.uniform(kwq, (D, D), minval=-bound, maxval=bound, dtype=jnp.float32)
    bq = jax.random.uniform(kbq, (D,), minval=-bound, maxval=bound, dtype=jnp.float32)
    wk = jax.random.uniform(kwk, (D, D), minval=-bound, maxval=bound, dtype=jnp.float32)
    bk = jax.random.uniform(kbk, (D,), minval=-bound, maxval=bound, dtype=jnp.float32)
    wv = jax.random.uniform(kwv, (D, D), minval=-bound, maxval=bound, dtype=jnp.float32)
    bv = jax.random.uniform(kbv, (D,), minval=-bound, maxval=bound, dtype=jnp.float32)
    params = (wq, bq, wk, bk, wv, bv)

    out = decoder_forward(qx, kx, vx, params, n_heads=H)
    out = jax.block_until_ready(out)

    ref = _reference(qx, kx, vx, params, H)
    assert out.shape == (B, S, D)
    assert jnp.allclose(out, ref, atol=1e-4, rtol=1e-4), "mismatch vs reference"

    print("KERNEL_OK")
</pallas_src>

<mosaic_0001>
module attributes {stable_mosaic.version = 11 : i64} {
  func.func @_decoder_kernel(%arg0: i32, %arg1: memref<1x8x32xf32, #tpu.memory_space<vmem>>, %arg2: memref<1x8x32xf32, #tpu.memory_space<vmem>>, %arg3: memref<1x8x32xf32, #tpu.memory_space<vmem>>, %arg4: memref<3x32x32xf32, #tpu.memory_space<vmem>>, %arg5: memref<3x32xf32, #tpu.memory_space<vmem>>, %arg6: memref<1x8x32xf32, #tpu.memory_space<vmem>>) attributes {dimension_semantics = [#tpu.dimension_semantics<parallel>], iteration_bounds = array<i64: 2>, scalar_prefetch = 0 : i64, scratch_operands = 0 : i64, tpu.core_type = #tpu.core_type<tc>, window_params = [{transform_indices = @transform_0, window_bounds = array<i64: 1, 8, 32>}, {transform_indices = @transform_1, window_bounds = array<i64: 1, 8, 32>}, {transform_indices = @transform_2, window_bounds = array<i64: 1, 8, 32>}, {pipeline_mode = #tpu.pipeline_mode<synchronous>, transform_indices = @transform_3, window_bounds = array<i64: 3, 32, 32>}, {pipeline_mode = #tpu.pipeline_mode<synchronous>, transform_indices = @transform_4, window_bounds = array<i64: 3, 32>}, {transform_indices = @transform_5, window_bounds = array<i64: 1, 8, 32>}]} {
    %c0 = arith.constant 0 : index
    %c0_0 = arith.constant 0 : index
    %c0_1 = arith.constant 0 : index
    %0 = vector.load %arg1[%c0, %c0_0, %c0_1] : memref<1x8x32xf32, #tpu.memory_space<vmem>>, vector<1x8x32xf32>
    %1 = vector.shape_cast %0 : vector<1x8x32xf32> to vector<8x32xf32>
    %c0_2 = arith.constant 0 : index
    %c0_3 = arith.constant 0 : index
    %c0_4 = arith.constant 0 : index
    %2 = vector.load %arg2[%c0_2, %c0_3, %c0_4] : memref<1x8x32xf32, #tpu.memory_space<vmem>>, vector<1x8x32xf32>
    %3 = vector.shape_cast %2 : vector<1x8x32xf32> to vector<8x32xf32>
    %c0_5 = arith.constant 0 : index
    %c0_6 = arith.constant 0 : index
    %c0_7 = arith.constant 0 : index
    %4 = vector.load %arg3[%c0_5, %c0_6, %c0_7] : memref<1x8x32xf32, #tpu.memory_space<vmem>>, vector<1x8x32xf32>
    %5 = vector.shape_cast %4 : vector<1x8x32xf32> to vector<8x32xf32>
    %c0_8 = arith.constant 0 : index
    %c0_9 = arith.constant 0 : index
    %6 = vector.load %arg5[%c0_8, %c0_9] : memref<3x32xf32, #tpu.memory_space<vmem>>, vector<3x32xf32>
    %c0_10 = arith.constant 0 : index
    %c0_11 = arith.constant 0 : index
    %c0_12 = arith.constant 0 : index
    %7 = vector.load %arg4[%c0_10, %c0_11, %c0_12] : memref<3x32x32xf32, #tpu.memory_space<vmem>>, vector<1x32x32xf32>
    %8 = vector.shape_cast %7 : vector<1x32x32xf32> to vector<32x32xf32>
    %cst = arith.constant dense<0.000000e+00> : vector<8x32xf32>
    %9 = tpu.matmul %1, %8, %cst {dimension_numbers = #tpu.dot_dimension_numbers<[1], [0], [0], [1], [0, 0, 1, 1], [], []>} : vector<8x32xf32>, vector<32x32xf32>, vector<8x32xf32> -> vector<8x32xf32>
    %10 = vector.extract_strided_slice %6 {offsets = [0, 0], sizes = [1, 32], strides = [1, 1]} : vector<3x32xf32> to vector<1x32xf32>
    %11 = vector.broadcast %10 : vector<1x32xf32> to vector<8x32xf32>
    %12 = arith.addf %9, %11 : vector<8x32xf32>
    %c1 = arith.constant 1 : index
    %c0_13 = arith.constant 0 : index
    %c0_14 = arith.constant 0 : index
    %13 = vector.load %arg4[%c1, %c0_13, %c0_14] : memref<3x32x32xf32, #tpu.memory_space<vmem>>, vector<1x32x32xf32>
    %14 = vector.shape_cast %13 : vector<1x32x32xf32> to vector<32x32xf32>
    %cst_15 = arith.constant dense<0.000000e+00> : vector<8x32xf32>
    %15 = tpu.matmul %3, %14, %cst_15 {dimension_numbers = #tpu.dot_dimension_numbers<[1], [0], [0], [1], [0, 0, 1, 1], [], []>} : vector<8x32xf32>, vector<32x32xf32>, vector<8x32xf32> -> vector<8x32xf32>
    %16 = vector.extract_strided_slice %6 {offsets = [1, 0], sizes = [1, 32], strides = [1, 1]} : vector<3x32xf32> to vector<1x32xf32>
    %17 = vector.broadcast %16 : vector<1x32xf32> to vector<8x32xf32>
    %18 = arith.addf %15, %17 : vector<8x32xf32>
    %c2 = arith.constant 2 : index
    %c0_16 = arith.constant 0 : index
    %c0_17 = arith.constant 0 : index
    %19 = vector.load %arg4[%c2, %c0_16, %c0_17] : memref<3x32x32xf32, #tpu.memory_space<vmem>>, vector<1x32x32xf32>
    %20 = vector.shape_cast %19 : vector<1x32x32xf32> to vector<32x32xf32>
    %cst_18 = arith.constant dense<0.000000e+00> : vector<8x32xf32>
    %21 = tpu.matmul %5, %20, %cst_18 {dimension_numbers = #tpu.dot_dimension_numbers<[1], [0], [0], [1], [0, 0, 1, 1], [], []>} : vector<8x32xf32>, vector<32x32xf32>, vector<8x32xf32> -> vector<8x32xf32>
    %22 = vector.extract_strided_slice %6 {offsets = [2, 0], sizes = [1, 32], strides = [1, 1]} : vector<3x32xf32> to vector<1x32xf32>
    %23 = vector.broadcast %22 : vector<1x32xf32> to vector<8x32xf32>
    %24 = arith.addf %21, %23 : vector<8x32xf32>
    %25 = vector.shape_cast %12 : vector<8x32xf32> to vector<8x4x8xf32>
    %26 = tpu.transpose %25, [1, 0, 2] : vector<8x4x8xf32> -> vector<4x8x8xf32>
    %27 = vector.shape_cast %18 : vector<8x32xf32> to vector<8x4x8xf32>
    %28 = tpu.transpose %27, [1, 0, 2] : vector<8x4x8xf32> -> vector<4x8x8xf32>
    %29 = vector.shape_cast %24 : vector<8x32xf32> to vector<8x4x8xf32>
    %30 = tpu.transpose %29, [1, 0, 2] : vector<8x4x8xf32> -> vector<4x8x8xf32>
    "tpu.trace_start"() <{level = 10 : i32, message = "hqd,hkd->hqk"}> : () -> ()
    %cst_19 = arith.constant dense<0.000000e+00> : vector<4x8x8xf32>
    %31 = tpu.matmul %26, %28, %cst_19 {dimension_numbers = #tpu.dot_dimension_numbers<[2], [2], [1], [1], [0, 0, 0, 1, 1, 1], [0], [0]>} : vector<4x8x8xf32>, vector<4x8x8xf32>, vector<4x8x8xf32> -> vector<4x8x8xf32>
    "tpu.trace_stop"() : () -> ()
    %cst_20 = arith.constant dense<0xFF800000> : vector<4x8xf32>
    %32 = vector.multi_reduction <maximumf>, %31, %cst_20 [2] : vector<4x8x8xf32> to vector<4x8xf32>
    %33 = vector.shape_cast %32 : vector<4x8xf32> to vector<4x8x1xf32>
    %34 = vector.broadcast %33 : vector<4x8x1xf32> to vector<4x8x8xf32>
    %35 = arith.subf %31, %34 : vector<4x8x8xf32>
    %36 = math.exp %35 : vector<4x8x8xf32>
    %cst_21 = arith.constant dense<0.000000e+00> : vector<4x8xf32>
    %37 = vector.multi_reduction <add>, %36, %cst_21 [2] : vector<4x8x8xf32> to vector<4x8xf32>
    %38 = vector.shape_cast %37 : vector<4x8xf32> to vector<4x8x1xf32>
    %39 = tpu.reciprocal %38 : vector<4x8x1xf32> -> vector<4x8x1xf32>
    %40 = vector.broadcast %39 : vector<4x8x1xf32> to vector<4x8x8xf32>
    %41 = arith.mulf %36, %40 : vector<4x8x8xf32>
    "tpu.trace_start"() <{level = 10 : i32, message = "hqk,hkd->hqd"}> : () -> ()
    %cst_22 = arith.constant dense<0.000000e+00> : vector<4x8x8xf32>
    %42 = tpu.matmul %41, %30, %cst_22 {dimension_numbers = #tpu.dot_dimension_numbers<[2], [1], [1], [2], [0, 0, 0, 1, 1, 2], [0], [0]>} : vector<4x8x8xf32>, vector<4x8x8xf32>, vector<4x8x8xf32> -> vector<4x8x8xf32>
    "tpu.trace_stop"() : () -> ()
    %43 = tpu.transpose %42, [1, 0, 2] : vector<4x8x8xf32> -> vector<8x4x8xf32>
    %44 = vector.shape_cast %43 : vector<8x4x8xf32> to vector<8x32xf32>
    %c0_23 = arith.constant 0 : index
    %c0_24 = arith.constant 0 : index
    %c0_25 = arith.constant 0 : index
    %45 = vector.load %arg6[%c0_23, %c0_24, %c0_25] : memref<1x8x32xf32, #tpu.memory_space<vmem>>, vector<1x8x32xf32>
    %46 = vector.shape_cast %45 : vector<1x8x32xf32> to vector<8x32xf32>
    %47 = vector.shape_cast %44 : vector<8x32xf32> to vector<1x8x32xf32>
    tpu.vector_store %arg6[%c0_23, %c0_24, %c0_25], %47 {strides = array<i32>} : memref<1x8x32xf32, #tpu.memory_space<vmem>>, vector<1x8x32xf32>,
    return
  }
  func.func @transform_0(%arg0: i32) -> (i32, i32, i32) {
    %c0_i32 = arith.constant 0 : i32
    %c0_i32_0 = arith.constant 0 : i32
    %c0_i32_1 = arith.constant 0 : i32
    return %arg0, %c0_i32, %c0_i32_0 : i32, i32, i32
  }
  func.func @transform_1(%arg0: i32) -> (i32, i32, i32) {
    %c0_i32 = arith.constant 0 : i32
    %c0_i32_0 = arith.constant 0 : i32
    %c0_i32_1 = arith.constant 0 : i32
    return %arg0, %c0_i32, %c0_i32_0 : i32, i32, i32
  }
  func.func @transform_2(%arg0: i32) -> (i32, i32, i32) {
    %c0_i32 = arith.constant 0 : i32
    %c0_i32_0 = arith.constant 0 : i32
    %c0_i32_1 = arith.constant 0 : i32
    return %arg0, %c0_i32, %c0_i32_0 : i32, i32, i32
  }
  func.func @transform_3(%arg0: i32) -> (i32, i32, i32) {
    %c0_i32 = arith.constant 0 : i32
    %c0_i32_0 = arith.constant 0 : i32
    %c0_i32_1 = arith.constant 0 : i32
    %c0_i32_2 = arith.constant 0 : i32
    return %c0_i32, %c0_i32_0, %c0_i32_1 : i32, i32, i32
  }
  func.func @transform_4(%arg0: i32) -> (i32, i32) {
    %c0_i32 = arith.constant 0 : i32
    %c0_i32_0 = arith.constant 0 : i32
    %c0_i32_1 = arith.constant 0 : i32
    return %c0_i32, %c0_i32_0 : i32, i32
  }
  func.func @transform_5(%arg0: i32) -> (i32, i32, i32) {
    %c0_i32 = arith.constant 0 : i32
    %c0_i32_0 = arith.constant 0 : i32
    %c0_i32_1 = arith.constant 0 : i32
    return %arg0, %c0_i32, %c0_i32_0 : i32, i32, i32
  }
}

</mosaic_0001>

<llo_original>
// kernel: tpu_custom_call.1
$region0: #{tpu_custom_call.1}
  #allocation0 [shape = 'u32[]', space=smem, size = 0x4, offset = 0x4, fixed_abs, tag = 'smem constant byte address 0x4 - core index']
  #allocation1 [shape = 'u32[144,128]{1,0:T(1,128)}', space=vmem, size = 0x12000, scoped, tag = 'internal scratch']
  %s0 = inlined_call_operand.hbm [shape: f32[2,8,32], index: 0, kind: input, shape index: {}]
  %s1 = inlined_call_operand.hbm [shape: f32[2,8,32], index: 1, kind: input, shape index: {}]
  %s2 = inlined_call_operand.hbm [shape: f32[2,8,32], index: 2, kind: input, shape index: {}]
  %s3 = inlined_call_operand.hbm [shape: f32[3,32,32], index: 3, kind: input, shape index: {}]
  %s4 = inlined_call_operand.vmem [shape: f32[3,32], index: 4, kind: input, shape index: {}]
  %s5 = inlined_call_operand.hbm [shape: f32[2,8,32], index: 5, kind: output, shape index: {}]
  %s6 = sld [smem:[#allocation0]]
  $region69: #{tpu_custom_call.1} parent=0
    _
  %s8 = ssub.s32 1, %s6
  %s9 = scalar_select 0, %s8, %s6
  $region1: #{tpu_custom_call.1} parent=0
    #allocation2 [shape = 'u8[8192]{0}', space=vmem, size = 0x2000, scoped, tag = 'input window, operand 0']
    #allocation3 [shape = 's32[2]{0}', space=sflag, size = 0x8, scoped, tag = 'scoped memory for tpu_custom_call.1']
    #allocation4 [shape = 's32[2]{0}', space=sflag, size = 0x8, scoped, tag = 'scoped memory for tpu_custom_call.1']
    #allocation5 [shape = 'u8[8192]{0}', space=vmem, size = 0x2000, scoped, tag = 'input window, operand 1']
    #allocation6 [shape = 's32[2]{0}', space=sflag, size = 0x8, scoped, tag = 'scoped memory for tpu_custom_call.1']
    #allocation7 [shape = 'u8[8192]{0}', space=vmem, size = 0x2000, scoped, tag = 'input window, operand 2']
    #allocation8 [shape = 'u8[49152]{0}', space=vmem, size = 0xc000, scoped, tag = 'input window, operand 3, single buffered']
    #allocation9 [shape = 's32[1]{0}', space=sflag, size = 0x4, scoped, tag = 'scoped memory for tpu_custom_call.1']
    #allocation10 [shape = 'u8[8192]{0}', space=vmem, size = 0x2000, scoped, tag = 'output window, operand 0']
    %10 = vsyncpa [#allocation3], 0
    %s11 = scalar_lea.sflag [#allocation3], 1
    %12 = vsyncpa %s11, 0
    %13 = vsyncpa [#allocation6], 0
    %s14 = scalar_lea.sflag [#allocation6], 1
    %15 = vsyncpa %s14, 0
    %16 = vsyncpa [#allocation9], 0
    %17 = vsyncpa [#allocation4], 0
    %s18 = scalar_lea.sflag [#allocation4], 1
    %19 = vsyncpa %s18, 0
    loop: start=0, step=1, limit=4
    $region2: #{tpu_custom_call.1} parent=1 // loop_pre_header
      _
    $region3: #{tpu_custom_call.1} parent=1 // loop_header
      %s21 = sphi 0, %s25
      %p22 = scmp.ge.s32.totalorder %s21, 4
      %s31 = sphi 0, %s33
      %s34 = sphi 0, %s31
      %s35 = sphi 0, %s34
      %s51 = sphi 0, %s35
      %s57 = sphi 0, %s59
      %s60 = sphi 0, %s57
      %s61 = sphi 0, %s60
      %s77 = sphi 0, %s61
      %s83 = sphi 0, %s85
      %s86 = sphi 0, %s83
      %s87 = sphi 0, %s86
      %s103 = sphi 0, %s87
      %s107 = sphi 0, %s107
      %s109 = sphi 0, %s107
      %s110 = sphi 0, %s109
      %s124 = sphi 0, %s110
      %s128 = sphi 0, %s128
      %s130 = sphi 0, %s128
      %s131 = sphi 0, %s130
      %s145 = sphi 0, %s131
      %s151 = sphi 0, %s153
      %s154 = sphi 0, %s151
      %s155 = sphi 0, %s154
      %s171 = sphi 0, %s155
    $region4: #{tpu_custom_call.1} parent=1 // loop_header_branch
      %24 = sbr.rel (%p22) target = $region8
    $region5: #{tpu_custom_call.1} parent=1 // loop_body
      %s26 = ssub.s32 %s21, 1
      %s27 = ssub.s32 %s21, 2
      %s28 = sadd.s32 %s21, 1
      %s29 = ssub.s32 %s21, %s28
      %p30 = scmp.eq.s32.totalorder %s29, 0
      %s32 = sadd.s32 %s31, 1
      %s33 = scalar_select %p30, %s31, %s32
      %p36 = pneg %p30
      %p37 = scmp.eq.s32.totalorder %s21, 1
      %p38 = por %p36, %p37
      %p39 = scmp.ne.s32.totalorder %s31, %s34
      %p40 = scmp.eq.s32.totalorder %s21, 0
      %p41 = por %p39, %p40
      %p42 = scmp.ne.s32.totalorder %s31, %s34
      %p43 = scmp.eq.s32.totalorder %s26, 1
      %p44 = por %p42, %p43
      %p45 = scmp.ne.s32.totalorder %s34, %s35
      %p46 = scmp.eq.s32.totalorder %s26, 0
      %p47 = por %p45, %p46
      %p48 = scmp.ne.s32.totalorder %s34, %s35
      %p49 = scmp.eq.s32.totalorder %s27, 1
      %p50 = por %p48, %p49
      %p52 = scmp.ne.s32.totalorder %s35, %s51
      %p53 = scmp.eq.s32.totalorder %s27, 0
      %p54 = por %p52, %p53
      %s55 = ssub.s32 %s21, %s28
      %p56 = scmp.eq.s32.totalorder %s55, 0
      %s58 = sadd.s32 %s57, 1
      %s59 = scalar_select %p56, %s57, %s58
      %p62 = pneg %p56
      %p63 = scmp.eq.s32.totalorder %s21, 1
      %p64 = por %p62, %p63
      %p65 = scmp.ne.s32.totalorder %s57, %s60
      %p66 = scmp.eq.s32.totalorder %s21, 0
      %p67 = por %p65, %p66
      %p68 = scmp.ne.s32.totalorder %s57, %s60
      %p69 = scmp.eq.s32.totalorder %s26, 1
      %p70 = por %p68, %p69
      %p71 = scmp.ne.s32.totalorder %s60, %s61
      %p72 = scmp.eq.s32.totalorder %s26, 0
      %p73 = por %p71, %p72
      %p74 = scmp.ne.s32.totalorder %s60, %s61
      %p75 = scmp.eq.s32.totalorder %s27, 1
      %p76 = por %p74, %p75
      %p78 = scmp.ne.s32.totalorder %s61, %s77
      %p79 = scmp.eq.s32.totalorder %s27, 0
      %p80 = por %p78, %p79
      %s81 = ssub.s32 %s21, %s28
      %p82 = scmp.eq.s32.totalorder %s81, 0
      %s84 = sadd.s32 %s83, 1
      %s85 = scalar_select %p82, %s83, %s84
      %p88 = pneg %p82
      %p89 = scmp.eq.s32.totalorder %s21, 1
      %p90 = por %p88, %p89
      %p91 = scmp.ne.s32.totalorder %s83, %s86
      %p92 = scmp.eq.s32.totalorder %s21, 0
      %p93 = por %p91, %p92
      %p94 = scmp.ne.s32.totalorder %s83, %s86
      %p95 = scmp.eq.s32.totalorder %s26, 1
      %p96 = por %p94, %p95
      %p97 = scmp.ne.s32.totalorder %s86, %s87
      %p98 = scmp.eq.s32.totalorder %s26, 0
      %p99 = por %p97, %p98
      %p100 = scmp.ne.s32.totalorder %s86, %s87
      %p101 = scmp.eq.s32.totalorder %s27, 1
      %p102 = por %p100, %p101
      %p104 = scmp.ne.s32.totalorder %s87, %s103
      %p105 = scmp.eq.s32.totalorder %s27, 0
      %p106 = por %p104, %p105
      %s108 = sadd.s32 %s107, 1
      %p111 = scmp.eq.s32.totalorder %s21, 1
      %p112 = scmp.ne.s32.totalorder %s107, %s109
      %p113 = scmp.eq.s32.totalorder %s21, 0
      %p114 = por %p112, %p113
      %p115 = scmp.ne.s32.totalorder %s107, %s109
      %p116 = scmp.eq.s32.totalorder %s26, 1
      %p117 = por %p115, %p116
      %p118 = scmp.ne.s32.totalorder %s109, %s110
      %p119 = scmp.eq.s32.totalorder %s26, 0
      %p120 = por %p118, %p119
      %p121 = scmp.ne.s32.totalorder %s109, %s110
      %p122 = scmp.eq.s32.totalorder %s27, 1
      %p123 = por %p121, %p122
      %p125 = scmp.ne.s32.totalorder %s110, %s124
      %p126 = scmp.eq.s32.totalorder %s27, 0
      %p127 = por %p125, %p126
      %s129 = sadd.s32 %s128, 1
      %p132 = scmp.eq.s32.totalorder %s21, 1
      %p133 = scmp.ne.s32.totalorder %s128, %s130
      %p134 = scmp.eq.s32.totalorder %s21, 0
      %p135 = por %p133, %p134
      %p136 = scmp.ne.s32.totalorder %s128, %s130
      %p137 = scmp.eq.s32.totalorder %s26, 1
      %p138 = por %p136, %p137
      %p139 = scmp.ne.s32.totalorder %s130, %s131
      %p140 = scmp.eq.s32.totalorder %s26, 0
      %p141 = por %p139, %p140
      %p142 = scmp.ne.s32.totalorder %s130, %s131
      %p143 = scmp.eq.s32.totalorder %s27, 1
      %p144 = por %p142, %p143
      %p146 = scmp.ne.s32.totalorder %s131, %s145
      %p147 = scmp.eq.s32.totalorder %s27, 0
      %p148 = por %p146, %p147
      %s149 = ssub.s32 %s21, %s28
      %p150 = scmp.eq.s32.totalorder %s149, 0
      %s152 = sadd.s32 %s151, 1
      %s153 = scalar_select %p150, %s151, %s152
      %p156 = pneg %p150
      %p157 = scmp.eq.s32.totalorder %s21, 1
      %p158 = por %p156, %p157
      %p159 = scmp.ne.s32.totalorder %s151, %s154
      %p160 = scmp.eq.s32.totalorder %s21, 0
      %p161 = por %p159, %p160
      %p162 = scmp.ne.s32.totalorder %s151, %s154
      %p163 = scmp.eq.s32.totalorder %s26, 1
      %p164 = por %p162, %p163
      %p165 = scmp.ne.s32.totalorder %s154, %s155
      %p166 = scmp.eq.s32.totalorder %s26, 0
      %p167 = por %p165, %p166
      %p168 = scmp.ne.s32.totalorder %s154, %s155
      %p169 = scmp.eq.s32.totalorder %s27, 1
      %p170 = por %p168, %p169
      %p172 = scmp.ne.s32.totalorder %s155, %s171
      %p173 = scmp.eq.s32.totalorder %s27, 0
      %p174 = por %p172, %p173
      %p175 = scmp.le.s32.totalorder 1, %s21
      %p176 = scmp.lt.s32.totalorder %s21, 3
      %p177 = pnand %p175, %p176
      %p178 = pneg %p177
      // Predicated region
      $region9: #{tpu_custom_call.1} parent=5 // pred_check
        _
      $region10: #{tpu_custom_call.1} parent=5 // pred_check_branch
        %180 = sbr.rel (%p177) target = $region12
      $region11: #{tpu_custom_call.1} parent=5 // pred_region
        %s181 = ssub.s32 %s21, 1
        // Predicated region
        $region13: #{tpu_custom_call.1} parent=11 // pred_check
          %p182 = pneg %p120
        $region14: #{tpu_custom_call.1} parent=11 // pred_check_branch
          %184 = sbr.rel (%p182) target = $region16
        $region15: #{tpu_custom_call.1} parent=11 // pred_region
          %s186 = ssub.s32 1536, 1536
          %187 = vsyncadd [#allocation9], %s186
          %s188 = sshll.u32 [#allocation8], 4
          %s189 = int_to_ptr.vmem [resolvable:$true] %s188
          %194 = dma.hbm_to_vmem [thread:$0]  %s3, 1536, %s189, [#allocation9], 128, 128, 8
        $region16: #{tpu_custom_call.1} parent=11 // pred_fallthru
          _
        // Predicated region
        $region17: #{tpu_custom_call.1} parent=11 // pred_check
          %p195 = pneg %p141
        $region18: #{tpu_custom_call.1} parent=11 // pred_check_branch
          %197 = sbr.rel (%p195) target = $region20
        $region19: #{tpu_custom_call.1} parent=11 // pred_region
          _
        $region20: #{tpu_custom_call.1} parent=11 // pred_fallthru
          _
      $region12: #{tpu_custom_call.1} parent=5 // pred_fallthru
        _
      %p198 = scmp.lt.s32.totalorder %s21, 2
      // Predicated region
      $region21: #{tpu_custom_call.1} parent=5 // pred_check
        %p199 = pneg %p198
      $region22: #{tpu_custom_call.1} parent=5 // pred_check_branch
        %201 = sbr.rel (%p199) target = $region24
      $region23: #{tpu_custom_call.1} parent=5 // pred_region
        // Predicated region
        $region25: #{tpu_custom_call.1} parent=23 // pred_check
          %p202 = pneg %p41
        $region26: #{tpu_custom_call.1} parent=23 // pred_check_branch
          %204 = sbr.rel (%p202) target = $region28
        $region27: #{tpu_custom_call.1} parent=23 // pred_region
          %s205 = sand.u32 %s31, 1
          %s206 = scalar_lea.sflag [#allocation3], %s205
          %s207 = sand.u32 %s31, 1
          %s208 = smul.addr %s207, 8
          %s209 = scalar_lea.vmem [#allocation2], %s208
          %s211 = ssub.s32 128, 128
          %212 = vsyncadd %s206, %s211
          %s213 = smul.addr %s21, 128
          %s214 = scalar_lea.hbm %s0, %s213
          %s216 = sshll.u32 %s209, 4
          %s217 = int_to_ptr.vmem [resolvable:$true] %s216
          %219 = dma.hbm_to_vmem [thread:$0]  %s214, 128, %s217, %s206
        $region28: #{tpu_custom_call.1} parent=23 // pred_fallthru
          _
        // Predicated region
        $region29: #{tpu_custom_call.1} parent=23 // pred_check
          %p220 = pneg %p67
        $region30: #{tpu_custom_call.1} parent=23 // pred_check_branch
          %222 = sbr.rel (%p220) target = $region32
        $region31: #{tpu_custom_call.1} parent=23 // pred_region
          %s223 = sand.u32 %s21, 1
          %s224 = scalar_lea.sflag [#allocation6], %s223
          %s225 = sand.u32 %s57, 1
          %s226 = smul.addr %s225, 8
          %s227 = scalar_lea.vmem [#allocation5], %s226
          %s229 = ssub.s32 128, 128
          %230 = vsyncadd %s224, %s229
          %s231 = smul.addr %s21, 128
          %s232 = scalar_lea.hbm %s1, %s231
          %s234 = sshll.u32 %s227, 4
          %s235 = int_to_ptr.vmem [resolvable:$true] %s234
          %237 = dma.hbm_to_vmem [thread:$0]  %s232, 128, %s235, %s224
        $region32: #{tpu_custom_call.1} parent=23 // pred_fallthru
          _
        // Predicated region
        $region33: #{tpu_custom_call.1} parent=23 // pred_check
          %p238 = pneg %p93
        $region34: #{tpu_custom_call.1} parent=23 // pred_check_branch
          %240 = sbr.rel (%p238) target = $region36
        $region35: #{tpu_custom_call.1} parent=23 // pred_region
          %s241 = sand.u32 %s21, 1
          %s242 = scalar_lea.sflag [#allocation6], %s241
          %s243 = sand.u32 %s83, 1
          %s244 = smul.addr %s243, 8
          %s245 = scalar_lea.vmem [#allocation7], %s244
          %s247 = ssub.s32 128, 128
          %248 = vsyncadd %s242, %s247
          %s249 = smul.addr %s21, 128
          %s250 = scalar_lea.hbm %s2, %s249
          %s252 = sshll.u32 %s245, 4
          %s253 = int_to_ptr.vmem [resolvable:$true] %s252
          %255 = dma.hbm_to_vmem [thread:$0]  %s250, 128, %s253, %s242
        $region36: #{tpu_custom_call.1} parent=23 // pred_fallthru
          _
      $region24: #{tpu_custom_call.1} parent=5 // pred_fallthru
        _
      %p256 = scmp.le.s32.totalorder 1, %s21
      %p257 = scmp.lt.s32.totalorder %s21, 3
      %p258 = pnand %p256, %p257
      %p259 = pneg %p258
      // Predicated region
      $region37: #{tpu_custom_call.1} parent=5 // pred_check
        _
      $region38: #{tpu_custom_call.1} parent=5 // pred_check_branch
        %261 = sbr.rel (%p258) target = $region40
      $region39: #{tpu_custom_call.1} parent=5 // pred_region
        %s262 = ssub.s32 %s21, 1
        %s263 = sand.u32 %s34, 1
        %s264 = scalar_lea.sflag [#allocation3], %s263
        %s265 = sand.u32 %s34, 1
        %s266 = smul.addr %s265, 8
        %s267 = scalar_lea.vmem [#allocation2], %s266
        // Predicated region
        $region41: #{tpu_custom_call.1} parent=39 // pred_check
          %p268 = pneg %p47
        $region42: #{tpu_custom_call.1} parent=39 // pred_check_branch
          %270 = sbr.rel (%p268) target = $region44
        $region43: #{tpu_custom_call.1} parent=39 // pred_region
          %271 = dma.done %s264, 128
        $region44: #{tpu_custom_call.1} parent=39 // pred_fallthru
          _
        %s272 = sand.u32 %s26, 1
        %s273 = scalar_lea.sflag [#allocation6], %s272
        %s274 = sand.u32 %s60, 1
        %s275 = smul.addr %s274, 8
        %s276 = scalar_lea.vmem [#allocation5], %s275
        // Predicated region
        $region45: #{tpu_custom_call.1} parent=39 // pred_check
          %p277 = pneg %p73
        $region46: #{tpu_custom_call.1} parent=39 // pred_check_branch
          %279 = sbr.rel (%p277) target = $region48
        $region47: #{tpu_custom_call.1} parent=39 // pred_region
          %280 = dma.done %s273, 128
        $region48: #{tpu_custom_call.1} parent=39 // pred_fallthru
          _
        %s281 = sand.u32 %s26, 1
        %s282 = scalar_lea.sflag [#allocation6], %s281
        %s283 = sand.u32 %s86, 1
        %s284 = smul.addr %s283, 8
        %s285 = scalar_lea.vmem [#allocation7], %s284
        // Predicated region
        $region49: #{tpu_custom_call.1} parent=39 // pred_check
          %p286 = pneg %p99
        $region50: #{tpu_custom_call.1} parent=39 // pred_check_branch
          %288 = sbr.rel (%p286) target = $region52
        $region51: #{tpu_custom_call.1} parent=39 // pred_region
          %289 = dma.done %s282, 128
        $region52: #{tpu_custom_call.1} parent=39 // pred_fallthru
          _
        // Predicated region
        $region53: #{tpu_custom_call.1} parent=39 // pred_check
          %p290 = pneg %p120
        $region54: #{tpu_custom_call.1} parent=39 // pred_check_branch
          %292 = sbr.rel (%p290) target = $region56
        $region55: #{tpu_custom_call.1} parent=39 // pred_region
          %293 = dma.done [#allocation9], 1536
        $region56: #{tpu_custom_call.1} parent=39 // pred_fallthru
          _
        %s294 = sand.u32 %s34, 1
        %s295 = scalar_lea.sflag [#allocation3], %s294
        %s296 = sand.u32 %s34, 1
        %s297 = smul.addr %s296, 8
        %s298 = scalar_lea.vmem [#allocation2], %s297
        %p299 = pneg %p47
        %p300 = pneg %p44
        %s301 = sand.u32 %s26, 1
        %s302 = scalar_lea.sflag [#allocation6], %s301
        %s303 = sand.u32 %s60, 1
        %s304 = smul.addr %s303, 8
        %s305 = scalar_lea.vmem [#allocation5], %s304
        %p306 = pneg %p73
        %p307 = pneg %p70
        %s308 = sand.u32 %s26, 1
        %s309 = scalar_lea.sflag [#allocation6], %s308
        %s310 = sand.u32 %s86, 1
        %s311 = smul.addr %s310, 8
        %s312 = scalar_lea.vmem [#allocation7], %s311
        %p313 = pneg %p99
        %p314 = pneg %p96
        %p315 = pneg %p120
        %p316 = pneg %p117
        %p317 = pneg %p141
        %p318 = pneg %p138
        %p319 = pneg %p167
        %p320 = pneg %p164
        %s321 = sand.u32 %s154, 1
        %s322 = scalar_lea.sflag [#allocation4], %s321
        %s323 = sand.u32 %s154, 1
        %s324 = smul.addr %s323, 8
        %s325 = scalar_lea.vmem [#allocation10], %s324
        %v326 = vld [vmem:[%s267] sm:$0xff]
        %v327 = vld [vmem:[%s276] sm:$0xff]
        %v328 = vld [vmem:[%s285] sm:$0xff]
        %v329 = vld [vmem:[%s4] sm:$0x7]
        %v330 = vld [vmem:[#allocation8] sm:$0xff]
        %v331 = vld [vmem:[#allocation8 + $0x8] sm:$0xff]
        %v332 = vld [vmem:[#allocation8 + $0x10] sm:$0xff]
        %v333 = vld [vmem:[#allocation8 + $0x18] sm:$0xff]
        %v334 = vlaneseq
        %v335 = vshrl.u32 %v334, 7
        %v336 = vsub.s32 0, %v335
        %v337 = vrot.slane %v329, %v336
        %vm338 = vcmask 261120
        %v340 = vsel %vm338, %v326, 0
        %342 = vmatprep.subr.mxu0 0.0
        %343 = vmatpush1.msra.mxu0 %v330
        %344 = vmatprep.subr.mxu0 0.0
        %345 = vmatpush1.msra.mxu0 %v331
        %346 = vmatprep.subr.mxu0 0.0
        %347 = vmatpush1.msra.mxu0 %v332
        %348 = vmatprep.subr.mxu0 0.0
        %349 = vmatpush1.msra.mxu0 %v333
        %350 = vmatprep.subr.mxu0 0.0
        %351 = vmatpush1.msra.mxu0 0.0
        %352 = vmatprep.subr.mxu0 0.0
        %353 = vmatpush1.msra.mxu0 0.0
        %354 = vmatprep.subr.mxu0 0.0
        %355 = vmatpush1.msra.mxu0 0.0
        %356 = vmatprep.subr.mxu0 0.0
        %357 = vmatpush1.msra.mxu0 0.0
        %358 = vmatprep.subr.mxu0 0.0
        %359 = vmatpush1.msra.mxu0 0.0
        %360 = vmatprep.subr.mxu0 0.0
        %361 = vmatpush1.msra.mxu0 0.0
        %362 = vmatprep.subr.mxu0 0.0
        %363 = vmatpush1.msra.mxu0 0.0
        %364 = vmatprep.subr.mxu0 0.0
        %365 = vmatpush1.msra.mxu0 0.0
        %366 = vmatprep.subr.mxu0 0.0
        %367 = vmatpush1.msra.mxu0 0.0
        %368 = vmatprep.subr.mxu0 0.0
        %369 = vmatpush1.msra.mxu0 0.0
        %370 = vmatprep.subr.mxu0 0.0
        %371 = vmatpush1.msra.mxu0 0.0
        %372 = vmatprep.subr.mxu0 0.0
        %373 = vmatpush1.msra.mxu0 0.0
        %374 = vmatprep.subr.mxu0 0.0
        %375 = vmatpush1.msra.mxu0 0.0
        %376 = vmatprep.subr.mxu0 0.0
        %377 = vmatpush1.msra.mxu0 0.0
        %378 = vmatprep.subr.mxu0 0.0
        %379 = vmatpush1.msra.mxu0 0.0
        %380 = vmatprep.subr.mxu0 0.0
        %381 = vmatpush1.msra.mxu0 0.0
        %382 = vmatprep.subr.mxu0 0.0
        %383 = vmatpush1.msra.mxu0 0.0
        %384 = vmatprep.subr.mxu0 0.0
        %385 = vmatpush1.msra.mxu0 0.0
        %386 = vmatprep.subr.mxu0 0.0
        %387 = vmatpush1.msra.mxu0 0.0
        %388 = vmatprep.subr.mxu0 0.0
        %389 = vmatpush1.msra.mxu0 0.0
        %390 = vmatprep.subr.mxu0 0.0
        %391 = vmatpush1.msra.mxu0 0.0
        %392 = vmatprep.subr.mxu0 0.0
        %393 = vmatpush1.msra.mxu0 0.0
        %394 = vmatprep.subr.mxu0 0.0
        %395 = vmatpush1.msra.mxu0 0.0
        %396 = vmatprep.subr.mxu0 0.0
        %397 = vmatpush1.msra.mxu0 0.0
        %398 = vmatprep.subr.mxu0 0.0
        %399 = vmatpush1.msra.mxu0 0.0
        %400 = vmatprep.subr.mxu0 0.0
        %401 = vmatpush1.msra.mxu0 0.0
        %402 = vmatprep.subr.mxu0 0.0
        %403 = vmatpush1.msra.mxu0 0.0
        %404 = vmatprep.subr.mxu0 0.0
        %405 = vmatpush1.msra.mxu0 0.0
        %406 = vmatprep.mubr.f32.mxu0 0.0
        %407 = vmatmul.mubr.f32.gmra.mrb[0].mxu0 %v340
        %v408 = vpop.f32.mrb[0].mxu0
        %v409 = vadd.f32 %v337, %v408
        %v410 = vpop.f32.mrb[0].mxu0
        %411 = vdwg.mxu0
        %s412 = scalar_lea.vmem [#allocation8], 32
        %v413 = vld [vmem:[%s412] sm:$0xff]
        %v414 = vld [vmem:[%s412 + $0x8] sm:$0xff]
        %v415 = vld [vmem:[%s412 + $0x10] sm:$0xff]
        %v416 = vld [vmem:[%s412 + $0x18] sm:$0xff]
        %v417 = vlaneseq
        %v418 = vshrl.u32 %v417, 7
        %v419 = vsub.s32 1, %v418
        %v420 = vrot.slane %v329, %v419
        %v422 = vsel %vm338, %v327, 0
        %424 = vmatprep.subr.mxu0 0.0
        %425 = vmatpush1.msra.mxu0 %v413
        %426 = vmatprep.subr.mxu0 0.0
        %427 = vmatpush1.msra.mxu0 %v414
        %428 = vmatprep.subr.mxu0 0.0
        %429 = vmatpush1.msra.mxu0 %v415
        %430 = vmatprep.subr.mxu0 0.0
        %431 = vmatpush1.msra.mxu0 %v416
        %432 = vmatprep.subr.mxu0 0.0
        %433 = vmatpush1.msra.mxu0 0.0
        %434 = vmatprep.subr.mxu0 0.0
        %435 = vmatpush1.msra.mxu0 0.0
        %436 = vmatprep.subr.mxu0 0.0
        %437 = vmatpush1.msra.mxu0 0.0
        %438 = vmatprep.subr.mxu0 0.0
        %439 = vmatpush1.msra.mxu0 0.0
        %440 = vmatprep.subr.mxu0 0.0
        %441 = vmatpush1.msra.mxu0 0.0
        %442 = vmatprep.subr.mxu0 0.0
        %443 = vmatpush1.msra.mxu0 0.0
        %444 = vmatprep.subr.mxu0 0.0
        %445 = vmatpush1.msra.mxu0 0.0
        %446 = vmatprep.subr.mxu0 0.0
        %447 = vmatpush1.msra.mxu0 0.0
        %448 = vmatprep.subr.mxu0 0.0
        %449 = vmatpush1.msra.mxu0 0.0
        %450 = vmatprep.subr.mxu0 0.0
        %451 = vmatpush1.msra.mxu0 0.0
        %452 = vmatprep.subr.mxu0 0.0
        %453 = vmatpush1.msra.mxu0 0.0
        %454 = vmatprep.subr.mxu0 0.0
        %455 = vmatpush1.msra.mxu0 0.0
        %456 = vmatprep.subr.mxu0 0.0
        %457 = vmatpush1.msra.mxu0 0.0
        %458 = vmatprep.subr.mxu0 0.0
        %459 = vmatpush1.msra.mxu0 0.0
        %460 = vmatprep.subr.mxu0 0.0
        %461 = vmatpush1.msra.mxu0 0.0
        %462 = vmatprep.subr.mxu0 0.0
        %463 = vmatpush1.msra.mxu0 0.0
        %464 = vmatprep.subr.mxu0 0.0
        %465 = vmatpush1.msra.mxu0 0.0
        %466 = vmatprep.subr.mxu0 0.0
        %467 = vmatpush1.msra.mxu0 0.0
        %468 = vmatprep.subr.mxu0 0.0
        %469 = vmatpush1.msra.mxu0 0.0
        %470 = vmatprep.subr.mxu0 0.0
        %471 = vmatpush1.msra.mxu0 0.0
        %472 = vmatprep.subr.mxu0 0.0
        %473 = vmatpush1.msra.mxu0 0.0
        %474 = vmatprep.subr.mxu0 0.0
        %475 = vmatpush1.msra.mxu0 0.0
        %476 = vmatprep.subr.mxu0 0.0
        %477 = vmatpush1.msra.mxu0 0.0
        %478 = vmatprep.subr.mxu0 0.0
        %479 = vmatpush1.msra.mxu0 0.0
        %480 = vmatprep.subr.mxu0 0.0
        %481 = vmatpush1.msra.mxu0 0.0
        %482 = vmatprep.subr.mxu0 0.0
        %483 = vmatpush1.msra.mxu0 0.0
        %484 = vmatprep.subr.mxu0 0.0
        %485 = vmatpush1.msra.mxu0 0.0
        %486 = vmatprep.subr.mxu0 0.0
        %487 = vmatpush1.msra.mxu0 0.0
        %488 = vmatprep.mubr.f32.mxu0 0.0
        %489 = vmatmul.mubr.f32.gmra.mrb[0].mxu0 %v422
        %v490 = vpop.f32.mrb[0].mxu0
        %v491 = vadd.f32 %v420, %v490
        %v492 = vpop.f32.mrb[0].mxu0
        %493 = vdwg.mxu0
        %s494 = scalar_lea.vmem [#allocation8], 64
        %v495 = vld [vmem:[%s494] sm:$0xff]
        %v496 = vld [vmem:[%s494 + $0x8] sm:$0xff]
        %v497 = vld [vmem:[%s494 + $0x10] sm:$0xff]
        %v498 = vld [vmem:[%s494 + $0x18] sm:$0xff]
        %v499 = vlaneseq
        %v500 = vshrl.u32 %v499, 7
        %v501 = vsub.s32 2, %v500
        %v502 = vrot.slane %v329, %v501
        %v504 = vsel %vm338, %v328, 0
        %506 = vmatprep.subr.mxu0 0.0
        %507 = vmatpush1.msra.mxu0 %v495
        %508 = vmatprep.subr.mxu0 0.0
        %509 = vmatpush1.msra.mxu0 %v496
        %510 = vmatprep.subr.mxu0 0.0
        %511 = vmatpush1.msra.mxu0 %v497
        %512 = vmatprep.subr.mxu0 0.0
        %513 = vmatpush1.msra.mxu0 %v498
        %514 = vmatprep.subr.mxu0 0.0
        %515 = vmatpush1.msra.mxu0 0.0
        %516 = vmatprep.subr.mxu0 0.0
        %517 = vmatpush1.msra.mxu0 0.0
        %518 = vmatprep.subr.mxu0 0.0
        %519 = vmatpush1.msra.mxu0 0.0
        %520 = vmatprep.subr.mxu0 0.0
        %521 = vmatpush1.msra.mxu0 0.0
        %522 = vmatprep.subr.mxu0 0.0
        %523 = vmatpush1.msra.mxu0 0.0
        %524 = vmatprep.subr.mxu0 0.0
        %525 = vmatpush1.msra.mxu0 0.0
        %526 = vmatprep.subr.mxu0 0.0
        %527 = vmatpush1.msra.mxu0 0.0
        %528 = vmatprep.subr.mxu0 0.0
        %529 = vmatpush1.msra.mxu0 0.0
        %530 = vmatprep.subr.mxu0 0.0
        %531 = vmatpush1.msra.mxu0 0.0
        %532 = vmatprep.subr.mxu0 0.0
        %533 = vmatpush1.msra.mxu0 0.0
        %534 = vmatprep.subr.mxu0 0.0
        %535 = vmatpush1.msra.mxu0 0.0
        %536 = vmatprep.subr.mxu0 0.0
        %537 = vmatpush1.msra.mxu0 0.0
        %538 = vmatprep.subr.mxu0 0.0
        %539 = vmatpush1.msra.mxu0 0.0
        %540 = vmatprep.subr.mxu0 0.0
        %541 = vmatpush1.msra.mxu0 0.0
        %542 = vmatprep.subr.mxu0 0.0
        %543 = vmatpush1.msra.mxu0 0.0
        %544 = vmatprep.subr.mxu0 0.0
        %545 = vmatpush1.msra.mxu0 0.0
        %546 = vmatprep.subr.mxu0 0.0
        %547 = vmatpush1.msra.mxu0 0.0
        %548 = vmatprep.subr.mxu0 0.0
        %549 = vmatpush1.msra.mxu0 0.0
        %550 = vmatprep.subr.mxu0 0.0
        %551 = vmatpush1.msra.mxu0 0.0
        %552 = vmatprep.subr.mxu0 0.0
        %553 = vmatpush1.msra.mxu0 0.0
        %554 = vmatprep.subr.mxu0 0.0
        %555 = vmatpush1.msra.mxu0 0.0
        %556 = vmatprep.subr.mxu0 0.0
        %557 = vmatpush1.msra.mxu0 0.0
        %558 = vmatprep.subr.mxu0 0.0
        %559 = vmatpush1.msra.mxu0 0.0
        %560 = vmatprep.subr.mxu0 0.0
        %561 = vmatpush1.msra.mxu0 0.0
        %562 = vmatprep.subr.mxu0 0.0
        %563 = vmatpush1.msra.mxu0 0.0
        %564 = vmatprep.subr.mxu0 0.0
        %565 = vmatpush1.msra.mxu0 0.0
        %566 = vmatprep.subr.mxu0 0.0
        %567 = vmatpush1.msra.mxu0 0.0
        %568 = vmatprep.subr.mxu0 0.0
        %569 = vmatpush1.msra.mxu0 0.0
        %570 = vmatprep.mubr.f32.mxu0 0.0
        %571 = vmatmul.mubr.f32.gmra.mrb[0].mxu0 %v504
        %v572 = vpop.f32.mrb[0].mxu0
        %v573 = vadd.f32 %v502, %v572
        %v574 = vpop.f32.mrb[0].mxu0
        %575 = vdwg.mxu0
        %577 = vrot.lane.b32.xlu0 %v409, 120
        %v578 = vpop.permute.xlu0 %577
        %580 = vrot.lane.b32.xlu0 %v409, 112
        %v581 = vpop.permute.xlu0 %580
        %583 = vrot.lane.b32.xlu0 %v409, 104
        %v584 = vpop.permute.xlu0 %583
        %v586 = vcombine.low %v409, %v581
        %v587 = vcombine.high %v409, %v581
        %v589 = vunpack.c.l.s4 1983009808
        %v590 = vunpack.c.0.s8 %v589
        %v591 = vlaneseq
        %v592 = vshrl.u32 %v591, 7
        %v593 = vsub.s32 %v590, %v592
        %v594 = vrot.slane %v586, %v593
        %v596 = vunpack.c.l.s4 1983009808
        %v597 = vunpack.c.0.s8 %v596
        %v598 = vlaneseq
        %v599 = vshrl.u32 %v598, 7
        %v600 = vsub.s32 %v597, %v599
        %v601 = vrot.slane %v587, %v600
        %v602 = vcombine.low %v578, %v584
        %v603 = vcombine.high %v578, %v584
        %v605 = vunpack.c.l.s4 1983009808
        %v606 = vunpack.c.0.s8 %v605
        %v607 = vlaneseq
        %v608 = vshrl.u32 %v607, 7
        %v609 = vsub.s32 %v606, %v608
        %v610 = vrot.slane %v602, %v609
        %v612 = vunpack.c.l.s4 1983009808
        %v613 = vunpack.c.0.s8 %v612
        %v614 = vlaneseq
        %v615 = vshrl.u32 %v614, 7
        %v616 = vsub.s32 %v613, %v615
        %v617 = vrot.slane %v603, %v616
        %v618 = vcombine.low %v594, %v610
        %v619 = vcombine.high %v594, %v610
        %v621 = vunpack.c.l.s4 1934713408
        %v622 = vunpack.c.0.s8 %v621
        %v623 = vlaneseq
        %v624 = vshrl.u32 %v623, 7
        %v625 = vsub.s32 %v622, %v624
        %v626 = vrot.slane %v618, %v625
        %v628 = vunpack.c.l.s4 1934713408
        %v629 = vunpack.c.0.s8 %v628
        %v630 = vlaneseq
        %v631 = vshrl.u32 %v630, 7
        %v632 = vsub.s32 %v629, %v631
        %v633 = vrot.slane %v619, %v632
        %v634 = vcombine.low %v601, %v617
        %v635 = vcombine.high %v601, %v617
        %v637 = vunpack.c.l.s4 1934713408
        %v638 = vunpack.c.0.s8 %v637
        %v639 = vlaneseq
        %v640 = vshrl.u32 %v639, 7
        %v641 = vsub.s32 %v638, %v640
        %v642 = vrot.slane %v634, %v641
        %v644 = vunpack.c.l.s4 1934713408
        %v645 = vunpack.c.0.s8 %v644
        %v646 = vlaneseq
        %v647 = vshrl.u32 %v646, 7
        %v648 = vsub.s32 %v645, %v647
        %v649 = vrot.slane %v635, %v648
        %v650 = vcombine.high %v626, 0.0
        %v651 = vcombine.high %v633, 0.0
        %v652 = vcombine.high %v642, 0.0
        %v653 = vcombine.high %v649, 0.0
        %v654 = vcombine.low %v626, %v633
        %v656 = vunpack.c.l.s4 1983009808
        %v657 = vunpack.c.0.s8 %v656
        %v658 = vlaneseq
        %v659 = vshrl.u32 %v658, 7
        %v660 = vsub.s32 %v657, %v659
        %v661 = vrot.slane %v654, %v660
        %v662 = vcombine.low %v650, %v651
        %v664 = vunpack.c.l.s4 1983009808
        %v665 = vunpack.c.0.s8 %v664
        %v666 = vlaneseq
        %v667 = vshrl.u32 %v666, 7
        %v668 = vsub.s32 %v665, %v667
        %v669 = vrot.slane %v662, %v668
        %v670 = vcombine.low %v642, %v649
        %v672 = vunpack.c.l.s4 1983009808
        %v673 = vunpack.c.0.s8 %v672
        %v674 = vlaneseq
        %v675 = vshrl.u32 %v674, 7
        %v676 = vsub.s32 %v673, %v675
        %v677 = vrot.slane %v670, %v676
        %v678 = vcombine.low %v652, %v653
        %v680 = vunpack.c.l.s4 1983009808
        %v681 = vunpack.c.0.s8 %v680
        %v682 = vlaneseq
        %v683 = vshrl.u32 %v682, 7
        %v684 = vsub.s32 %v681, %v683
        %v685 = vrot.slane %v678, %v684
        %v686 = vcombine.low %v661, %v669
        %v687 = vcombine.high %v661, %v669
        %v689 = vunpack.c.l.s4 1934713408
        %v690 = vunpack.c.0.s8 %v689
        %v691 = vlaneseq
        %v692 = vshrl.u32 %v691, 7
        %v693 = vsub.s32 %v690, %v692
        %v694 = vrot.slane %v686, %v693
        %v696 = vunpack.c.l.s4 1934713408
        %v697 = vunpack.c.0.s8 %v696
        %v698 = vlaneseq
        %v699 = vshrl.u32 %v698, 7
        %v700 = vsub.s32 %v697, %v699
        %v701 = vrot.slane %v687, %v700
        %v702 = vcombine.low %v677, %v685
        %v703 = vcombine.high %v677, %v685
        %v705 = vunpack.c.l.s4 1934713408
        %v706 = vunpack.c.0.s8 %v705
        %v707 = vlaneseq
        %v708 = vshrl.u32 %v707, 7
        %v709 = vsub.s32 %v706, %v708
        %v710 = vrot.slane %v702, %v709
        %v712 = vunpack.c.l.s4 1934713408
        %v713 = vunpack.c.0.s8 %v712
        %v714 = vlaneseq
        %v715 = vshrl.u32 %v714, 7
        %v716 = vsub.s32 %v713, %v715
        %v717 = vrot.slane %v703, %v716
        %v718 = vcombine.low %v694, %v710
        %v719 = vcombine.high %v694, %v710
        %v720 = vcombine.low %v701, %v717
        %v721 = vcombine.high %v701, %v717
        %723 = vrot.lane.b32.xlu0 %v491, 120
        %v724 = vpop.permute.xlu0 %723
        %726 = vrot.lane.b32.xlu0 %v491, 112
        %v727 = vpop.permute.xlu0 %726
        %729 = vrot.lane.b32.xlu0 %v491, 104
        %v730 = vpop.permute.xlu0 %729
        %v732 = vcombine.low %v491, %v727
        %v733 = vcombine.high %v491, %v727
        %v735 = vunpack.c.l.s4 1983009808
        %v736 = vunpack.c.0.s8 %v735
        %v737 = vlaneseq
        %v738 = vshrl.u32 %v737, 7
        %v739 = vsub.s32 %v736, %v738
        %v740 = vrot.slane %v732, %v739
        %v742 = vunpack.c.l.s4 1983009808
        %v743 = vunpack.c.0.s8 %v742
        %v744 = vlaneseq
        %v745 = vshrl.u32 %v744, 7
        %v746 = vsub.s32 %v743, %v745
        %v747 = vrot.slane %v733, %v746
        %v748 = vcombine.low %v724, %v730
        %v749 = vcombine.high %v724, %v730
        %v751 = vunpack.c.l.s4 1983009808
        %v752 = vunpack.c.0.s8 %v751
        %v753 = vlaneseq
        %v754 = vshrl.u32 %v753, 7
        %v755 = vsub.s32 %v752, %v754
        %v756 = vrot.slane %v748, %v755
        %v758 = vunpack.c.l.s4 1983009808
        %v759 = vunpack.c.0.s8 %v758
        %v760 = vlaneseq
        %v761 = vshrl.u32 %v760, 7
        %v762 = vsub.s32 %v759, %v761
        %v763 = vrot.slane %v749, %v762
        %v764 = vcombine.low %v740, %v756
        %v765 = vcombine.high %v740, %v756
        %v767 = vunpack.c.l.s4 1934713408
        %v768 = vunpack.c.0.s8 %v767
        %v769 = vlaneseq
        %v770 = vshrl.u32 %v769, 7
        %v771 = vsub.s32 %v768, %v770
        %v772 = vrot.slane %v764, %v771
        %v774 = vunpack.c.l.s4 1934713408
        %v775 = vunpack.c.0.s8 %v774
        %v776 = vlaneseq
        %v777 = vshrl.u32 %v776, 7
        %v778 = vsub.s32 %v775, %v777
        %v779 = vrot.slane %v765, %v778
        %v780 = vcombine.low %v747, %v763
        %v781 = vcombine.high %v747, %v763
        %v783 = vunpack.c.l.s4 1934713408
        %v784 = vunpack.c.0.s8 %v783
        %v785 = vlaneseq
        %v786 = vshrl.u32 %v785, 7
        %v787 = vsub.s32 %v784, %v786
        %v788 = vrot.slane %v780, %v787
        %v790 = vunpack.c.l.s4 1934713408
        %v791 = vunpack.c.0.s8 %v790
        %v792 = vlaneseq
        %v793 = vshrl.u32 %v792, 7
        %v794 = vsub.s32 %v791, %v793
        %v795 = vrot.slane %v781, %v794
        %v796 = vcombine.high %v772, 0.0
        %v797 = vcombine.high %v779, 0.0
        %v798 = vcombine.high %v788, 0.0
        %v799 = vcombine.high %v795, 0.0
        %v800 = vcombine.low %v772, %v779
        %v802 = vunpack.c.l.s4 1983009808
        %v803 = vunpack.c.0.s8 %v802
        %v804 = vlaneseq
        %v805 = vshrl.u32 %v804, 7
        %v806 = vsub.s32 %v803, %v805
        %v807 = vrot.slane %v800, %v806
        %v808 = vcombine.low %v796, %v797
        %v810 = vunpack.c.l.s4 1983009808
        %v811 = vunpack.c.0.s8 %v810
        %v812 = vlaneseq
        %v813 = vshrl.u32 %v812, 7
        %v814 = vsub.s32 %v811, %v813
        %v815 = vrot.slane %v808, %v814
        %v816 = vcombine.low %v788, %v795
        %v818 = vunpack.c.l.s4 1983009808
        %v819 = vunpack.c.0.s8 %v818
        %v820 = vlaneseq
        %v821 = vshrl.u32 %v820, 7
        %v822 = vsub.s32 %v819, %v821
        %v823 = vrot.slane %v816, %v822
        %v824 = vcombine.low %v798, %v799
        %v826 = vunpack.c.l.s4 1983009808
        %v827 = vunpack.c.0.s8 %v826
        %v828 = vlaneseq
        %v829 = vshrl.u32 %v828, 7
        %v830 = vsub.s32 %v827, %v829
        %v831 = vrot.slane %v824, %v830
        %v832 = vcombine.low %v807, %v815
        %v833 = vcombine.high %v807, %v815
        %v835 = vunpack.c.l.s4 1934713408
        %v836 = vunpack.c.0.s8 %v835
        %v837 = vlaneseq
        %v838 = vshrl.u32 %v837, 7
        %v839 = vsub.s32 %v836, %v838
        %v840 = vrot.slane %v832, %v839
        %v842 = vunpack.c.l.s4 1934713408
        %v843 = vunpack.c.0.s8 %v842
        %v844 = vlaneseq
        %v845 = vshrl.u32 %v844, 7
        %v846 = vsub.s32 %v843, %v845
        %v847 = vrot.slane %v833, %v846
        %v848 = vcombine.low %v823, %v831
        %v849 = vcombine.high %v823, %v831
        %v851 = vunpack.c.l.s4 1934713408
        %v852 = vunpack.c.0.s8 %v851
        %v853 = vlaneseq
        %v854 = vshrl.u32 %v853, 7
        %v855 = vsub.s32 %v852, %v854
        %v856 = vrot.slane %v848, %v855
        %v858 = vunpack.c.l.s4 1934713408
        %v859 = vunpack.c.0.s8 %v858
        %v860 = vlaneseq
        %v861 = vshrl.u32 %v860, 7
        %v862 = vsub.s32 %v859, %v861
        %v863 = vrot.slane %v849, %v862
        %v864 = vcombine.low %v840, %v856
        %v865 = vcombine.high %v840, %v856
        %v866 = vcombine.low %v847, %v863
        %v867 = vcombine.high %v847, %v863
        %869 = vrot.lane.b32.xlu0 %v573, 120
        %v870 = vpop.permute.xlu0 %869
        %872 = vrot.lane.b32.xlu0 %v573, 112
        %v873 = vpop.permute.xlu0 %872
        %875 = vrot.lane.b32.xlu0 %v573, 104
        %v876 = vpop.permute.xlu0 %875
        %v878 = vcombine.low %v573, %v873
        %v879 = vcombine.high %v573, %v873
        %v881 = vunpack.c.l.s4 1983009808
        %v882 = vunpack.c.0.s8 %v881
        %v883 = vlaneseq
        %v884 = vshrl.u32 %v883, 7
        %v885 = vsub.s32 %v882, %v884
        %v886 = vrot.slane %v878, %v885
        %v888 = vunpack.c.l.s4 1983009808
        %v889 = vunpack.c.0.s8 %v888
        %v890 = vlaneseq
        %v891 = vshrl.u32 %v890, 7
        %v892 = vsub.s32 %v889, %v891
        %v893 = vrot.slane %v879, %v892
        %v894 = vcombine.low %v870, %v876
        %v895 = vcombine.high %v870, %v876
        %v897 = vunpack.c.l.s4 1983009808
        %v898 = vunpack.c.0.s8 %v897
        %v899 = vlaneseq
        %v900 = vshrl.u32 %v899, 7
        %v901 = vsub.s32 %v898, %v900
        %v902 = vrot.slane %v894, %v901
        %v904 = vunpack.c.l.s4 1983009808
        %v905 = vunpack.c.0.s8 %v904
        %v906 = vlaneseq
        %v907 = vshrl.u32 %v906, 7
        %v908 = vsub.s32 %v905, %v907
        %v909 = vrot.slane %v895, %v908
        %v910 = vcombine.low %v886, %v902
        %v911 = vcombine.high %v886, %v902
        %v913 = vunpack.c.l.s4 1934713408
        %v914 = vunpack.c.0.s8 %v913
        %v915 = vlaneseq
        %v916 = vshrl.u32 %v915, 7
        %v917 = vsub.s32 %v914, %v916
        %v918 = vrot.slane %v910, %v917
        %v920 = vunpack.c.l.s4 1934713408
        %v921 = vunpack.c.0.s8 %v920
        %v922 = vlaneseq
        %v923 = vshrl.u32 %v922, 7
        %v924 = vsub.s32 %v921, %v923
        %v925 = vrot.slane %v911, %v924
        %v926 = vcombine.low %v893, %v909
        %v927 = vcombine.high %v893, %v909
        %v929 = vunpack.c.l.s4 1934713408
        %v930 = vunpack.c.0.s8 %v929
        %v931 = vlaneseq
        %v932 = vshrl.u32 %v931, 7
        %v933 = vsub.s32 %v930, %v932
        %v934 = vrot.slane %v926, %v933
        %v936 = vunpack.c.l.s4 1934713408
        %v937 = vunpack.c.0.s8 %v936
        %v938 = vlaneseq
        %v939 = vshrl.u32 %v938, 7
        %v940 = vsub.s32 %v937, %v939
        %v941 = vrot.slane %v927, %v940
        %v942 = vcombine.high %v918, 0.0
        %v943 = vcombine.high %v925, 0.0
        %v944 = vcombine.high %v934, 0.0
        %v945 = vcombine.high %v941, 0.0
        %v946 = vcombine.low %v918, %v925
        %v948 = vunpack.c.l.s4 1983009808
        %v949 = vunpack.c.0.s8 %v948
        %v950 = vlaneseq
        %v951 = vshrl.u32 %v950, 7
        %v952 = vsub.s32 %v949, %v951
        %v953 = vrot.slane %v946, %v952
        %v954 = vcombine.low %v942, %v943
        %v956 = vunpack.c.l.s4 1983009808
        %v957 = vunpack.c.0.s8 %v956
        %v958 = vlaneseq
        %v959 = vshrl.u32 %v958, 7
        %v960 = vsub.s32 %v957, %v959
        %v961 = vrot.slane %v954, %v960
        %v962 = vcombine.low %v934, %v941
        %v964 = vunpack.c.l.s4 1983009808
        %v965 = vunpack.c.0.s8 %v964
        %v966 = vlaneseq
        %v967 = vshrl.u32 %v966, 7
        %v968 = vsub.s32 %v965, %v967
        %v969 = vrot.slane %v962, %v968
        %v970 = vcombine.low %v944, %v945
        %v972 = vunpack.c.l.s4 1983009808
        %v973 = vunpack.c.0.s8 %v972
        %v974 = vlaneseq
        %v975 = vshrl.u32 %v974, 7
        %v976 = vsub.s32 %v973, %v975
        %v977 = vrot.slane %v970, %v976
        %v978 = vcombine.low %v953, %v961
        %v979 = vcombine.high %v953, %v961
        %v981 = vunpack.c.l.s4 1934713408
        %v982 = vunpack.c.0.s8 %v981
        %v983 = vlaneseq
        %v984 = vshrl.u32 %v983, 7
        %v985 = vsub.s32 %v982, %v984
        %v986 = vrot.slane %v978, %v985
        %v988 = vunpack.c.l.s4 1934713408
        %v989 = vunpack.c.0.s8 %v988
        %v990 = vlaneseq
        %v991 = vshrl.u32 %v990, 7
        %v992 = vsub.s32 %v989, %v991
        %v993 = vrot.slane %v979, %v992
        %v994 = vcombine.low %v969, %v977
        %v995 = vcombine.high %v969, %v977
        %v997 = vunpack.c.l.s4 1934713408
        %v998 = vunpack.c.0.s8 %v997
        %v999 = vlaneseq
        %v1000 = vshrl.u32 %v999, 7
        %v1001 = vsub.s32 %v998, %v1000
        %v1002 = vrot.slane %v994, %v1001
        %v1004 = vunpack.c.l.s4 1934713408
        %v1005 = vunpack.c.0.s8 %v1004
        %v1006 = vlaneseq
        %v1007 = vshrl.u32 %v1006, 7
        %v1008 = vsub.s32 %v1005, %v1007
        %v1009 = vrot.slane %v995, %v1008
        %v1010 = vcombine.low %v986, %v1002
        %v1011 = vcombine.high %v986, %v1002
        %v1012 = vcombine.low %v993, %v1009
        %v1013 = vcombine.high %v993, %v1009
        %vm1014 = vcmask 64512
        %v1016 = vsel %vm1014, %v718, 0
        %v1019 = vsel %vm1014, %v864, 0
        %1021 = vmatprep.subr.mxu0 0.0
        %1022 = vmatpush1.xpose.msra.mxu0 %v1019
        %1023 = vmatprep.subr.mxu0 0.0
        %1024 = vmatpush1.xpose.msra.mxu0 0.0
        %1025 = vmatprep.subr.mxu0 0.0
        %1026 = vmatpush1.xpose.msra.mxu0 0.0
        %1027 = vmatprep.subr.mxu0 0.0
        %1028 = vmatpush1.xpose.msra.mxu0 0.0
        %1029 = vmatprep.subr.mxu0 0.0
        %1030 = vmatpush1.xpose.msra.mxu0 0.0
        %1031 = vmatprep.subr.mxu0 0.0
        %1032 = vmatpush1.xpose.msra.mxu0 0.0
        %1033 = vmatprep.subr.mxu0 0.0
        %1034 = vmatpush1.xpose.msra.mxu0 0.0
        %1035 = vmatprep.subr.mxu0 0.0
        %1036 = vmatpush1.xpose.msra.mxu0 0.0
        %1037 = vmatprep.subr.mxu0 0.0
        %1038 = vmatpush1.xpose.msra.mxu0 0.0
        %1039 = vmatprep.subr.mxu0 0.0
        %1040 = vmatpush1.xpose.msra.mxu0 0.0
        %1041 = vmatprep.subr.mxu0 0.0
        %1042 = vmatpush1.xpose.msra.mxu0 0.0
        %1043 = vmatprep.subr.mxu0 0.0
        %1044 = vmatpush1.xpose.msra.mxu0 0.0
        %1045 = vmatprep.subr.mxu0 0.0
        %1046 = vmatpush1.xpose.msra.mxu0 0.0
        %1047 = vmatprep.subr.mxu0 0.0
        %1048 = vmatpush1.xpose.msra.mxu0 0.0
        %1049 = vmatprep.subr.mxu0 0.0
        %1050 = vmatpush1.xpose.msra.mxu0 0.0
        %1051 = vmatprep.subr.mxu0 0.0
        %1052 = vmatpush1.xpose.msra.mxu0 0.0
        %1053 = vmatprep.subr.mxu0 0.0
        %1054 = vmatpush1.xpose.msra.mxu0 0.0
        %1055 = vmatprep.subr.mxu0 0.0
        %1056 = vmatpush1.xpose.msra.mxu0 0.0
        %1057 = vmatprep.subr.mxu0 0.0
        %1058 = vmatpush1.xpose.msra.mxu0 0.0
        %1059 = vmatprep.subr.mxu0 0.0
        %1060 = vmatpush1.xpose.msra.mxu0 0.0
        %1061 = vmatprep.subr.mxu0 0.0
        %1062 = vmatpush1.xpose.msra.mxu0 0.0
        %1063 = vmatprep.subr.mxu0 0.0
        %1064 = vmatpush1.xpose.msra.mxu0 0.0
        %1065 = vmatprep.subr.mxu0 0.0
        %1066 = vmatpush1.xpose.msra.mxu0 0.0
        %1067 = vmatprep.subr.mxu0 0.0
        %1068 = vmatpush1.xpose.msra.mxu0 0.0
        %1069 = vmatprep.subr.mxu0 0.0
        %1070 = vmatpush1.xpose.msra.mxu0 0.0
        %1071 = vmatprep.subr.mxu0 0.0
        %1072 = vmatpush1.xpose.msra.mxu0 0.0
        %1073 = vmatprep.subr.mxu0 0.0
        %1074 = vmatpush1.xpose.msra.mxu0 0.0
        %1075 = vmatprep.subr.mxu0 0.0
        %1076 = vmatpush1.xpose.msra.mxu0 0.0
        %1077 = vmatprep.subr.mxu0 0.0
        %1078 = vmatpush1.xpose.msra.mxu0 0.0
        %1079 = vmatprep.subr.mxu0 0.0
        %1080 = vmatpush1.xpose.msra.mxu0 0.0
        %1081 = vmatprep.subr.mxu0 0.0
        %1082 = vmatpush1.xpose.msra.mxu0 0.0
        %1083 = vmatprep.subr.mxu0 0.0
        %1084 = vmatpush1.xpose.msra.mxu0 0.0
        %1085 = vmatprep.mubr.f32.mxu0 0.0
        %1086 = vmatmul.mubr.f32.gmra.mrb[0].mxu0 %v1016
        %v1087 = vpop.f32.mrb[0].mxu0
        %v1088 = vadd.f32 0.0, %v1087
        %v1089 = vpop.f32.mrb[0].mxu0
        %1090 = vdwg.mxu0
        %v1092 = vsel %vm1014, %v719, 0
        %v1095 = vsel %vm1014, %v865, 0
        %1097 = vmatprep.subr.mxu0 0.0
        %1098 = vmatpush1.xpose.msra.mxu0 %v1095
        %1099 = vmatprep.subr.mxu0 0.0
        %1100 = vmatpush1.xpose.msra.mxu0 0.0
        %1101 = vmatprep.subr.mxu0 0.0
        %1102 = vmatpush1.xpose.msra.mxu0 0.0
        %1103 = vmatprep.subr.mxu0 0.0
        %1104 = vmatpush1.xpose.msra.mxu0 0.0
        %1105 = vmatprep.subr.mxu0 0.0
        %1106 = vmatpush1.xpose.msra.mxu0 0.0
        %1107 = vmatprep.subr.mxu0 0.0
        %1108 = vmatpush1.xpose.msra.mxu0 0.0
        %1109 = vmatprep.subr.mxu0 0.0
        %1110 = vmatpush1.xpose.msra.mxu0 0.0
        %1111 = vmatprep.subr.mxu0 0.0
        %1112 = vmatpush1.xpose.msra.mxu0 0.0
        %1113 = vmatprep.subr.mxu0 0.0
        %1114 = vmatpush1.xpose.msra.mxu0 0.0
        %1115 = vmatprep.subr.mxu0 0.0
        %1116 = vmatpush1.xpose.msra.mxu0 0.0
        %1117 = vmatprep.subr.mxu0 0.0
        %1118 = vmatpush1.xpose.msra.mxu0 0.0
        %1119 = vmatprep.subr.mxu0 0.0
        %1120 = vmatpush1.xpose.msra.mxu0 0.0
        %1121 = vmatprep.subr.mxu0 0.0
        %1122 = vmatpush1.xpose.msra.mxu0 0.0
        %1123 = vmatprep.subr.mxu0 0.0
        %1124 = vmatpush1.xpose.msra.mxu0 0.0
        %1125 = vmatprep.subr.mxu0 0.0
        %1126 = vmatpush1.xpose.msra.mxu0 0.0
        %1127 = vmatprep.subr.mxu0 0.0
        %1128 = vmatpush1.xpose.msra.mxu0 0.0
        %1129 = vmatprep.subr.mxu0 0.0
        %1130 = vmatpush1.xpose.msra.mxu0 0.0
        %1131 = vmatprep.subr.mxu0 0.0
        %1132 = vmatpush1.xpose.msra.mxu0 0.0
        %1133 = vmatprep.subr.mxu0 0.0
        %1134 = vmatpush1.xpose.msra.mxu0 0.0
        %1135 = vmatprep.subr.mxu0 0.0
        %1136 = vmatpush1.xpose.msra.mxu0 0.0
        %1137 = vmatprep.subr.mxu0 0.0
        %1138 = vmatpush1.xpose.msra.mxu0 0.0
        %1139 = vmatprep.subr.mxu0 0.0
        %1140 = vmatpush1.xpose.msra.mxu0 0.0
        %1141 = vmatprep.subr.mxu0 0.0
        %1142 = vmatpush1.xpose.msra.mxu0 0.0
        %1143 = vmatprep.subr.mxu0 0.0
        %1144 = vmatpush1.xpose.msra.mxu0 0.0
        %1145 = vmatprep.subr.mxu0 0.0
        %1146 = vmatpush1.xpose.msra.mxu0 0.0
        %1147 = vmatprep.subr.mxu0 0.0
        %1148 = vmatpush1.xpose.msra.mxu0 0.0
        %1149 = vmatprep.subr.mxu0 0.0
        %1150 = vmatpush1.xpose.msra.mxu0 0.0
        %1151 = vmatprep.subr.mxu0 0.0
        %1152 = vmatpush1.xpose.msra.mxu0 0.0
        %1153 = vmatprep.subr.mxu0 0.0
        %1154 = vmatpush1.xpose.msra.mxu0 0.0
        %1155 = vmatprep.subr.mxu0 0.0
        %1156 = vmatpush1.xpose.msra.mxu0 0.0
        %1157 = vmatprep.subr.mxu0 0.0
        %1158 = vmatpush1.xpose.msra.mxu0 0.0
        %1159 = vmatprep.subr.mxu0 0.0
        %1160 = vmatpush1.xpose.msra.mxu0 0.0
        %1161 = vmatprep.mubr.f32.mxu0 0.0
        %1162 = vmatmul.mubr.f32.gmra.mrb[0].mxu0 %v1092
        %v1163 = vpop.f32.mrb[0].mxu0
        %v1164 = vadd.f32 0.0, %v1163
        %v1165 = vpop.f32.mrb[0].mxu0
        %1166 = vdwg.mxu0
        %v1168 = vsel %vm1014, %v720, 0
        %v1171 = vsel %vm1014, %v866, 0
        %1173 = vmatprep.subr.mxu0 0.0
        %1174 = vmatpush1.xpose.msra.mxu0 %v1171
        %1175 = vmatprep.subr.mxu0 0.0
        %1176 = vmatpush1.xpose.msra.mxu0 0.0
        %1177 = vmatprep.subr.mxu0 0.0
        %1178 = vmatpush1.xpose.msra.mxu0 0.0
        %1179 = vmatprep.subr.mxu0 0.0
        %1180 = vmatpush1.xpose.msra.mxu0 0.0
        %1181 = vmatprep.subr.mxu0 0.0
        %1182 = vmatpush1.xpose.msra.mxu0 0.0
        %1183 = vmatprep.subr.mxu0 0.0
        %1184 = vmatpush1.xpose.msra.mxu0 0.0
        %1185 = vmatprep.subr.mxu0 0.0
        %1186 = vmatpush1.xpose.msra.mxu0 0.0
        %1187 = vmatprep.subr.mxu0 0.0
        %1188 = vmatpush1.xpose.msra.mxu0 0.0
        %1189 = vmatprep.subr.mxu0 0.0
        %1190 = vmatpush1.xpose.msra.mxu0 0.0
        %1191 = vmatprep.subr.mxu0 0.0
        %1192 = vmatpush1.xpose.msra.mxu0 0.0
        %1193 = vmatprep.subr.mxu0 0.0
        %1194 = vmatpush1.xpose.msra.mxu0 0.0
        %1195 = vmatprep.subr.mxu0 0.0
        %1196 = vmatpush1.xpose.msra.mxu0 0.0
        %1197 = vmatprep.subr.mxu0 0.0
        %1198 = vmatpush1.xpose.msra.mxu0 0.0
        %1199 = vmatprep.subr.mxu0 0.0
        %1200 = vmatpush1.xpose.msra.mxu0 0.0
        %1201 = vmatprep.subr.mxu0 0.0
        %1202 = vmatpush1.xpose.msra.mxu0 0.0
        %1203 = vmatprep.subr.mxu0 0.0
        %1204 = vmatpush1.xpose.msra.mxu0 0.0
        %1205 = vmatprep.subr.mxu0 0.0
        %1206 = vmatpush1.xpose.msra.mxu0 0.0
        %1207 = vmatprep.subr.mxu0 0.0
        %1208 = vmatpush1.xpose.msra.mxu0 0.0
        %1209 = vmatprep.subr.mxu0 0.0
        %1210 = vmatpush1.xpose.msra.mxu0 0.0
        %1211 = vmatprep.subr.mxu0 0.0
        %1212 = vmatpush1.xpose.msra.mxu0 0.0
        %1213 = vmatprep.subr.mxu0 0.0
        %1214 = vmatpush1.xpose.msra.mxu0 0.0
        %1215 = vmatprep.subr.mxu0 0.0
        %1216 = vmatpush1.xpose.msra.mxu0 0.0
        %1217 = vmatprep.subr.mxu0 0.0
        %1218 = vmatpush1.xpose.msra.mxu0 0.0
        %1219 = vmatprep.subr.mxu0 0.0
        %1220 = vmatpush1.xpose.msra.mxu0 0.0
        %1221 = vmatprep.subr.mxu0 0.0
        %1222 = vmatpush1.xpose.msra.mxu0 0.0
        %1223 = vmatprep.subr.mxu0 0.0
        %1224 = vmatpush1.xpose.msra.mxu0 0.0
        %1225 = vmatprep.subr.mxu0 0.0
        %1226 = vmatpush1.xpose.msra.mxu0 0.0
        %1227 = vmatprep.subr.mxu0 0.0
        %1228 = vmatpush1.xpose.msra.mxu0 0.0
        %1229 = vmatprep.subr.mxu0 0.0
        %1230 = vmatpush1.xpose.msra.mxu0 0.0
        %1231 = vmatprep.subr.mxu0 0.0
        %1232 = vmatpush1.xpose.msra.mxu0 0.0
        %1233 = vmatprep.subr.mxu0 0.0
        %1234 = vmatpush1.xpose.msra.mxu0 0.0
        %1235 = vmatprep.subr.mxu0 0.0
        %1236 = vmatpush1.xpose.msra.mxu0 0.0
        %1237 = vmatprep.mubr.f32.mxu0 0.0
        %1238 = vmatmul.mubr.f32.gmra.mrb[0].mxu0 %v1168
        %v1239 = vpop.f32.mrb[0].mxu0
        %v1240 = vadd.f32 0.0, %v1239
        %v1241 = vpop.f32.mrb[0].mxu0
        %1242 = vdwg.mxu0
        %v1244 = vsel %vm1014, %v721, 0
        %v1247 = vsel %vm1014, %v867, 0
        %1249 = vmatprep.subr.mxu0 0.0
        %1250 = vmatpush1.xpose.msra.mxu0 %v1247
        %1251 = vmatprep.subr.mxu0 0.0
        %1252 = vmatpush1.xpose.msra.mxu0 0.0
        %1253 = vmatprep.subr.mxu0 0.0
        %1254 = vmatpush1.xpose.msra.mxu0 0.0
        %1255 = vmatprep.subr.mxu0 0.0
        %1256 = vmatpush1.xpose.msra.mxu0 0.0
        %1257 = vmatprep.subr.mxu0 0.0
        %1258 = vmatpush1.xpose.msra.mxu0 0.0
        %1259 = vmatprep.subr.mxu0 0.0
        %1260 = vmatpush1.xpose.msra.mxu0 0.0
        %1261 = vmatprep.subr.mxu0 0.0
        %1262 = vmatpush1.xpose.msra.mxu0 0.0
        %1263 = vmatprep.subr.mxu0 0.0
        %1264 = vmatpush1.xpose.msra.mxu0 0.0
        %1265 = vmatprep.subr.mxu0 0.0
        %1266 = vmatpush1.xpose.msra.mxu0 0.0
        %1267 = vmatprep.subr.mxu0 0.0
        %1268 = vmatpush1.xpose.msra.mxu0 0.0
        %1269 = vmatprep.subr.mxu0 0.0
        %1270 = vmatpush1.xpose.msra.mxu0 0.0
        %1271 = vmatprep.subr.mxu0 0.0
        %1272 = vmatpush1.xpose.msra.mxu0 0.0
        %1273 = vmatprep.subr.mxu0 0.0
        %1274 = vmatpush1.xpose.msra.mxu0 0.0
        %1275 = vmatprep.subr.mxu0 0.0
        %1276 = vmatpush1.xpose.msra.mxu0 0.0
        %1277 = vmatprep.subr.mxu0 0.0
        %1278 = vmatpush1.xpose.msra.mxu0 0.0
        %1279 = vmatprep.subr.mxu0 0.0
        %1280 = vmatpush1.xpose.msra.mxu0 0.0
        %1281 = vmatprep.subr.mxu0 0.0
        %1282 = vmatpush1.xpose.msra.mxu0 0.0
        %1283 = vmatprep.subr.mxu0 0.0
        %1284 = vmatpush1.xpose.msra.mxu0 0.0
        %1285 = vmatprep.subr.mxu0 0.0
        %1286 = vmatpush1.xpose.msra.mxu0 0.0
        %1287 = vmatprep.subr.mxu0 0.0
        %1288 = vmatpush1.xpose.msra.mxu0 0.0
        %1289 = vmatprep.subr.mxu0 0.0
        %1290 = vmatpush1.xpose.msra.mxu0 0.0
        %1291 = vmatprep.subr.mxu0 0.0
        %1292 = vmatpush1.xpose.msra.mxu0 0.0
        %1293 = vmatprep.subr.mxu0 0.0
        %1294 = vmatpush1.xpose.msra.mxu0 0.0
        %1295 = vmatprep.subr.mxu0 0.0
        %1296 = vmatpush1.xpose.msra.mxu0 0.0
        %1297 = vmatprep.subr.mxu0 0.0
        %1298 = vmatpush1.xpose.msra.mxu0 0.0
        %1299 = vmatprep.subr.mxu0 0.0
        %1300 = vmatpush1.xpose.msra.mxu0 0.0
        %1301 = vmatprep.subr.mxu0 0.0
        %1302 = vmatpush1.xpose.msra.mxu0 0.0
        %1303 = vmatprep.subr.mxu0 0.0
        %1304 = vmatpush1.xpose.msra.mxu0 0.0
        %1305 = vmatprep.subr.mxu0 0.0
        %1306 = vmatpush1.xpose.msra.mxu0 0.0
        %1307 = vmatprep.subr.mxu0 0.0
        %1308 = vmatpush1.xpose.msra.mxu0 0.0
        %1309 = vmatprep.subr.mxu0 0.0
        %1310 = vmatpush1.xpose.msra.mxu0 0.0
        %1311 = vmatprep.subr.mxu0 0.0
        %1312 = vmatpush1.xpose.msra.mxu0 0.0
        %1313 = vmatprep.mubr.f32.mxu0 0.0
        %1314 = vmatmul.mubr.f32.gmra.mrb[0].mxu0 %v1244
        %v1315 = vpop.f32.mrb[0].mxu0
        %v1316 = vadd.f32 0.0, %v1315
        %v1317 = vpop.f32.mrb[0].mxu0
        %1318 = vdwg.mxu0
        %v1319 = vsel %vm1014, %v1088, -inf
        %1320 = vmax.xlane.f32.xlu0 %v1319
        %v1321 = vpop.xlane.xlu0 %1320
        %v1322 = vsel %vm1014, %v1164, -inf
        %1323 = vmax.xlane.f32.xlu0 %v1322
        %v1324 = vpop.xlane.xlu0 %1323
        %v1325 = vsel %vm1014, %v1240, -inf
        %1326 = vmax.xlane.f32.xlu0 %v1325
        %v1327 = vpop.xlane.xlu0 %1326
        %v1328 = vsel %vm1014, %v1316, -inf
        %1329 = vmax.xlane.f32.xlu0 %v1328
        %v1330 = vpop.xlane.xlu0 %1329
        %v1331 = vsub.f32 %v1088, %v1321
        %v1332 = vsub.f32 %v1164, %v1324
        %v1333 = vsub.f32 %v1240, %v1327
        %v1334 = vsub.f32 %v1316, %v1330
        %v1335 = vmul.f32 %v1331, 1.442695
        %v1336 = vpow.pop %v1335
        %v1337 = vmul.f32 %v1332, 1.442695
        %v1338 = vpow.pop %v1337
        %v1339 = vmul.f32 %v1333, 1.442695
        %v1340 = vpow.pop %v1339
        %v1341 = vmul.f32 %v1334, 1.442695
        %v1342 = vpow.pop %v1341
        %v1343 = vsel %vm1014, %v1336, 0.0
        %1344 = vadd.xlane.f32.xlu0 %v1343
        %v1345 = vpop.xlane.xlu0 %1344
        %v1346 = vsel %vm1014, %v1338, 0.0
        %1347 = vadd.xlane.f32.xlu0 %v1346
        %v1348 = vpop.xlane.xlu0 %1347
        %v1349 = vsel %vm1014, %v1340, 0.0
        %1350 = vadd.xlane.f32.xlu0 %v1349
        %v1351 = vpop.xlane.xlu0 %1350
        %v1352 = vsel %vm1014, %v1342, 0.0
        %1353 = vadd.xlane.f32.xlu0 %v1352
        %v1354 = vpop.xlane.xlu0 %1353
        %v1355 = vrcp.pop %v1345
        %v1356 = vrcp.pop %v1348
        %v1357 = vrcp.pop %v1351
        %v1358 = vrcp.pop %v1354
        %v1359 = vmul.f32 %v1336, %v1355
        %v1360 = vmul.f32 %v1338, %v1356
        %v1361 = vmul.f32 %v1340, %v1357
        %v1362 = vmul.f32 %v1342, %v1358
        %v1364 = vsel %vm1014, %v1359, 0
        %1366 = vmatprep.subr.mxu0 0.0
        %1367 = vmatpush1.msra.mxu0 %v1010
        %1368 = vmatprep.subr.mxu0 0.0
        %1369 = vmatpush1.msra.mxu0 0.0
        %1370 = vmatprep.subr.mxu0 0.0
        %1371 = vmatpush1.msra.mxu0 0.0
        %1372 = vmatprep.subr.mxu0 0.0
        %1373 = vmatpush1.msra.mxu0 0.0
        %1374 = vmatprep.subr.mxu0 0.0
        %1375 = vmatpush1.msra.mxu0 0.0
        %1376 = vmatprep.subr.mxu0 0.0
        %1377 = vmatpush1.msra.mxu0 0.0
        %1378 = vmatprep.subr.mxu0 0.0
        %1379 = vmatpush1.msra.mxu0 0.0
        %1380 = vmatprep.subr.mxu0 0.0
        %1381 = vmatpush1.msra.mxu0 0.0
        %1382 = vmatprep.subr.mxu0 0.0
        %1383 = vmatpush1.msra.mxu0 0.0
        %1384 = vmatprep.subr.mxu0 0.0
        %1385 = vmatpush1.msra.mxu0 0.0
        %1386 = vmatprep.subr.mxu0 0.0
        %1387 = vmatpush1.msra.mxu0 0.0
        %1388 = vmatprep.subr.mxu0 0.0
        %1389 = vmatpush1.msra.mxu0 0.0
        %1390 = vmatprep.subr.mxu0 0.0
        %1391 = vmatpush1.msra.mxu0 0.0
        %1392 = vmatprep.subr.mxu0 0.0
        %1393 = vmatpush1.msra.mxu0 0.0
        %1394 = vmatprep.subr.mxu0 0.0
        %1395 = vmatpush1.msra.mxu0 0.0
        %1396 = vmatprep.subr.mxu0 0.0
        %1397 = vmatpush1.msra.mxu0 0.0
        %1398 = vmatprep.subr.mxu0 0.0
        %1399 = vmatpush1.msra.mxu0 0.0
        %1400 = vmatprep.subr.mxu0 0.0
        %1401 = vmatpush1.msra.mxu0 0.0
        %1402 = vmatprep.subr.mxu0 0.0
        %1403 = vmatpush1.msra.mxu0 0.0
        %1404 = vmatprep.subr.mxu0 0.0
        %1405 = vmatpush1.msra.mxu0 0.0
        %1406 = vmatprep.subr.mxu0 0.0
        %1407 = vmatpush1.msra.mxu0 0.0
        %1408 = vmatprep.subr.mxu0 0.0
        %1409 = vmatpush1.msra.mxu0 0.0
        %1410 = vmatprep.subr.mxu0 0.0
        %1411 = vmatpush1.msra.mxu0 0.0
        %1412 = vmatprep.subr.mxu0 0.0
        %1413 = vmatpush1.msra.mxu0 0.0
        %1414 = vmatprep.subr.mxu0 0.0
        %1415 = vmatpush1.msra.mxu0 0.0
        %1416 = vmatprep.subr.mxu0 0.0
        %1417 = vmatpush1.msra.mxu0 0.0
        %1418 = vmatprep.subr.mxu0 0.0
        %1419 = vmatpush1.msra.mxu0 0.0
        %1420 = vmatprep.subr.mxu0 0.0
        %1421 = vmatpush1.msra.mxu0 0.0
        %1422 = vmatprep.subr.mxu0 0.0
        %1423 = vmatpush1.msra.mxu0 0.0
        %1424 = vmatprep.subr.mxu0 0.0
        %1425 = vmatpush1.msra.mxu0 0.0
        %1426 = vmatprep.subr.mxu0 0.0
        %1427 = vmatpush1.msra.mxu0 0.0
        %1428 = vmatprep.subr.mxu0 0.0
        %1429 = vmatpush1.msra.mxu0 0.0
        %1430 = vmatprep.mubr.f32.mxu0 0.0
        %1431 = vmatmul.mubr.f32.gmra.mrb[0].mxu0 %v1364
        %v1432 = vpop.f32.mrb[0].mxu0
        %v1433 = vadd.f32 0.0, %v1432
        %v1434 = vpop.f32.mrb[0].mxu0
        %1435 = vdwg.mxu0
        %v1437 = vsel %vm1014, %v1360, 0
        %1439 = vmatprep.subr.mxu0 0.0
        %1440 = vmatpush1.msra.mxu0 %v1011
        %1441 = vmatprep.subr.mxu0 0.0
        %1442 = vmatpush1.msra.mxu0 0.0
        %1443 = vmatprep.subr.mxu0 0.0
        %1444 = vmatpush1.msra.mxu0 0.0
        %1445 = vmatprep.subr.mxu0 0.0
        %1446 = vmatpush1.msra.mxu0 0.0
        %1447 = vmatprep.subr.mxu0 0.0
        %1448 = vmatpush1.msra.mxu0 0.0
        %1449 = vmatprep.subr.mxu0 0.0
        %1450 = vmatpush1.msra.mxu0 0.0
        %1451 = vmatprep.subr.mxu0 0.0
        %1452 = vmatpush1.msra.mxu0 0.0
        %1453 = vmatprep.subr.mxu0 0.0
        %1454 = vmatpush1.msra.mxu0 0.0
        %1455 = vmatprep.subr.mxu0 0.0
        %1456 = vmatpush1.msra.mxu0 0.0
        %1457 = vmatprep.subr.mxu0 0.0
        %1458 = vmatpush1.msra.mxu0 0.0
        %1459 = vmatprep.subr.mxu0 0.0
        %1460 = vmatpush1.msra.mxu0 0.0
        %1461 = vmatprep.subr.mxu0 0.0
        %1462 = vmatpush1.msra.mxu0 0.0
        %1463 = vmatprep.subr.mxu0 0.0
        %1464 = vmatpush1.msra.mxu0 0.0
        %1465 = vmatprep.subr.mxu0 0.0
        %1466 = vmatpush1.msra.mxu0 0.0
        %1467 = vmatprep.subr.mxu0 0.0
        %1468 = vmatpush1.msra.mxu0 0.0
        %1469 = vmatprep.subr.mxu0 0.0
        %1470 = vmatpush1.msra.mxu0 0.0
        %1471 = vmatprep.subr.mxu0 0.0
        %1472 = vmatpush1.msra.mxu0 0.0
        %1473 = vmatprep.subr.mxu0 0.0
        %1474 = vmatpush1.msra.mxu0 0.0
        %1475 = vmatprep.subr.mxu0 0.0
        %1476 = vmatpush1.msra.mxu0 0.0
        %1477 = vmatprep.subr.mxu0 0.0
        %1478 = vmatpush1.msra.mxu0 0.0
        %1479 = vmatprep.subr.mxu0 0.0
        %1480 = vmatpush1.msra.mxu0 0.0
        %1481 = vmatprep.subr.mxu0 0.0
        %1482 = vmatpush1.msra.mxu0 0.0
        %1483 = vmatprep.subr.mxu0 0.0
        %1484 = vmatpush1.msra.mxu0 0.0
        %1485 = vmatprep.subr.mxu0 0.0
        %1486 = vmatpush1.msra.mxu0 0.0
        %1487 = vmatprep.subr.mxu0 0.0
        %1488 = vmatpush1.msra.mxu0 0.0
        %1489 = vmatprep.subr.mxu0 0.0
        %1490 = vmatpush1.msra.mxu0 0.0
        %1491 = vmatprep.subr.mxu0 0.0
        %1492 = vmatpush1.msra.mxu0 0.0
        %1493 = vmatprep.subr.mxu0 0.0
        %1494 = vmatpush1.msra.mxu0 0.0
        %1495 = vmatprep.subr.mxu0 0.0
        %1496 = vmatpush1.msra.mxu0 0.0
        %1497 = vmatprep.subr.mxu0 0.0
        %1498 = vmatpush1.msra.mxu0 0.0
        %1499 = vmatprep.subr.mxu0 0.0
        %1500 = vmatpush1.msra.mxu0 0.0
        %1501 = vmatprep.subr.mxu0 0.0
        %1502 = vmatpush1.msra.mxu0 0.0
        %1503 = vmatprep.mubr.f32.mxu0 0.0
        %1504 = vmatmul.mubr.f32.gmra.mrb[0].mxu0 %v1437
        %v1505 = vpop.f32.mrb[0].mxu0
        %v1506 = vadd.f32 0.0, %v1505
        %v1507 = vpop.f32.mrb[0].mxu0
        %1508 = vdwg.mxu0
        %v1510 = vsel %vm1014, %v1361, 0
        %1512 = vmatprep.subr.mxu0 0.0
        %1513 = vmatpush1.msra.mxu0 %v1012
        %1514 = vmatprep.subr.mxu0 0.0
        %1515 = vmatpush1.msra.mxu0 0.0
        %1516 = vmatprep.subr.mxu0 0.0
        %1517 = vmatpush1.msra.mxu0 0.0
        %1518 = vmatprep.subr.mxu0 0.0
        %1519 = vmatpush1.msra.mxu0 0.0
        %1520 = vmatprep.subr.mxu0 0.0
        %1521 = vmatpush1.msra.mxu0 0.0
        %1522 = vmatprep.subr.mxu0 0.0
        %1523 = vmatpush1.msra.mxu0 0.0
        %1524 = vmatprep.subr.mxu0 0.0
        %1525 = vmatpush1.msra.mxu0 0.0
        %1526 = vmatprep.subr.mxu0 0.0
        %1527 = vmatpush1.msra.mxu0 0.0
        %1528 = vmatprep.subr.mxu0 0.0
        %1529 = vmatpush1.msra.mxu0 0.0
        %1530 = vmatprep.subr.mxu0 0.0
        %1531 = vmatpush1.msra.mxu0 0.0
        %1532 = vmatprep.subr.mxu0 0.0
        %1533 = vmatpush1.msra.mxu0 0.0
        %1534 = vmatprep.subr.mxu0 0.0
        %1535 = vmatpush1.msra.mxu0 0.0
        %1536 = vmatprep.subr.mxu0 0.0
        %1537 = vmatpush1.msra.mxu0 0.0
        %1538 = vmatprep.subr.mxu0 0.0
        %1539 = vmatpush1.msra.mxu0 0.0
        %1540 = vmatprep.subr.mxu0 0.0
        %1541 = vmatpush1.msra.mxu0 0.0
        %1542 = vmatprep.subr.mxu0 0.0
        %1543 = vmatpush1.msra.mxu0 0.0
        %1544 = vmatprep.subr.mxu0 0.0
        %1545 = vmatpush1.msra.mxu0 0.0
        %1546 = vmatprep.subr.mxu0 0.0
        %1547 = vmatpush1.msra.mxu0 0.0
        %1548 = vmatprep.subr.mxu0 0.0
        %1549 = vmatpush1.msra.mxu0 0.0
        %1550 = vmatprep.subr.mxu0 0.0
        %1551 = vmatpush1.msra.mxu0 0.0
        %1552 = vmatprep.subr.mxu0 0.0
        %1553 = vmatpush1.msra.mxu0 0.0
        %1554 = vmatprep.subr.mxu0 0.0
        %1555 = vmatpush1.msra.mxu0 0.0
        %1556 = vmatprep.subr.mxu0 0.0
        %1557 = vmatpush1.msra.mxu0 0.0
        %1558 = vmatprep.subr.mxu0 0.0
        %1559 = vmatpush1.msra.mxu0 0.0
        %1560 = vmatprep.subr.mxu0 0.0
        %1561 = vmatpush1.msra.mxu0 0.0
        %1562 = vmatprep.subr.mxu0 0.0
        %1563 = vmatpush1.msra.mxu0 0.0
        %1564 = vmatprep.subr.mxu0 0.0
        %1565 = vmatpush1.msra.mxu0 0.0
        %1566 = vmatprep.subr.mxu0 0.0
        %1567 = vmatpush1.msra.mxu0 0.0
        %1568 = vmatprep.subr.mxu0 0.0
        %1569 = vmatpush1.msra.mxu0 0.0
        %1570 = vmatprep.subr.mxu0 0.0
        %1571 = vmatpush1.msra.mxu0 0.0
        %1572 = vmatprep.subr.mxu0 0.0
        %1573 = vmatpush1.msra.mxu0 0.0
        %1574 = vmatprep.subr.mxu0 0.0
        %1575 = vmatpush1.msra.mxu0 0.0
        %1576 = vmatprep.mubr.f32.mxu0 0.0
        %1577 = vmatmul.mubr.f32.gmra.mrb[0].mxu0 %v1510
        %v1578 = vpop.f32.mrb[0].mxu0
        %v1579 = vadd.f32 0.0, %v1578
        %v1580 = vpop.f32.mrb[0].mxu0
        %1581 = vdwg.mxu0
        %v1583 = vsel %vm1014, %v1362, 0
        %1585 = vmatprep.subr.mxu0 0.0
        %1586 = vmatpush1.msra.mxu0 %v1013
        %1587 = vmatprep.subr.mxu0 0.0
        %1588 = vmatpush1.msra.mxu0 0.0
        %1589 = vmatprep.subr.mxu0 0.0
        %1590 = vmatpush1.msra.mxu0 0.0
        %1591 = vmatprep.subr.mxu0 0.0
        %1592 = vmatpush1.msra.mxu0 0.0
        %1593 = vmatprep.subr.mxu0 0.0
        %1594 = vmatpush1.msra.mxu0 0.0
        %1595 = vmatprep.subr.mxu0 0.0
        %1596 = vmatpush1.msra.mxu0 0.0
        %1597 = vmatprep.subr.mxu0 0.0
        %1598 = vmatpush1.msra.mxu0 0.0
        %1599 = vmatprep.subr.mxu0 0.0
        %1600 = vmatpush1.msra.mxu0 0.0
        %1601 = vmatprep.subr.mxu0 0.0
        %1602 = vmatpush1.msra.mxu0 0.0
        %1603 = vmatprep.subr.mxu0 0.0
        %1604 = vmatpush1.msra.mxu0 0.0
        %1605 = vmatprep.subr.mxu0 0.0
        %1606 = vmatpush1.msra.mxu0 0.0
        %1607 = vmatprep.subr.mxu0 0.0
        %1608 = vmatpush1.msra.mxu0 0.0
        %1609 = vmatprep.subr.mxu0 0.0
        %1610 = vmatpush1.msra.mxu0 0.0
        %1611 = vmatprep.subr.mxu0 0.0
        %1612 = vmatpush1.msra.mxu0 0.0
        %1613 = vmatprep.subr.mxu0 0.0
        %1614 = vmatpush1.msra.mxu0 0.0
        %1615 = vmatprep.subr.mxu0 0.0
        %1616 = vmatpush1.msra.mxu0 0.0
        %1617 = vmatprep.subr.mxu0 0.0
        %1618 = vmatpush1.msra.mxu0 0.0
        %1619 = vmatprep.subr.mxu0 0.0
        %1620 = vmatpush1.msra.mxu0 0.0
        %1621 = vmatprep.subr.mxu0 0.0
        %1622 = vmatpush1.msra.mxu0 0.0
        %1623 = vmatprep.subr.mxu0 0.0
        %1624 = vmatpush1.msra.mxu0 0.0
        %1625 = vmatprep.subr.mxu0 0.0
        %1626 = vmatpush1.msra.mxu0 0.0
        %1627 = vmatprep.subr.mxu0 0.0
        %1628 = vmatpush1.msra.mxu0 0.0
        %1629 = vmatprep.subr.mxu0 0.0
        %1630 = vmatpush1.msra.mxu0 0.0
        %1631 = vmatprep.subr.mxu0 0.0
        %1632 = vmatpush1.msra.mxu0 0.0
        %1633 = vmatprep.subr.mxu0 0.0
        %1634 = vmatpush1.msra.mxu0 0.0
        %1635 = vmatprep.subr.mxu0 0.0
        %1636 = vmatpush1.msra.mxu0 0.0
        %1637 = vmatprep.subr.mxu0 0.0
        %1638 = vmatpush1.msra.mxu0 0.0
        %1639 = vmatprep.subr.mxu0 0.0
        %1640 = vmatpush1.msra.mxu0 0.0
        %1641 = vmatprep.subr.mxu0 0.0
        %1642 = vmatpush1.msra.mxu0 0.0
        %1643 = vmatprep.subr.mxu0 0.0
        %1644 = vmatpush1.msra.mxu0 0.0
        %1645 = vmatprep.subr.mxu0 0.0
        %1646 = vmatpush1.msra.mxu0 0.0
        %1647 = vmatprep.subr.mxu0 0.0
        %1648 = vmatpush1.msra.mxu0 0.0
        %1649 = vmatprep.mubr.f32.mxu0 0.0
        %1650 = vmatmul.mubr.f32.gmra.mrb[0].mxu0 %v1583
        %v1651 = vpop.f32.mrb[0].mxu0
        %v1652 = vadd.f32 0.0, %v1651
        %v1653 = vpop.f32.mrb[0].mxu0
        %1654 = vdwg.mxu0
        %v1655 = vcombine.low %v1433, %v1579
        %v1656 = vcombine.high %v1433, %v1579
        %v1658 = vunpack.c.l.s4 1983009808
        %v1659 = vunpack.c.0.s8 %v1658
        %v1660 = vlaneseq
        %v1661 = vshrl.u32 %v1660, 7
        %v1662 = vsub.s32 %v1659, %v1661
        %v1663 = vrot.slane %v1655, %v1662
        %v1665 = vunpack.c.l.s4 1983009808
        %v1666 = vunpack.c.0.s8 %v1665
        %v1667 = vlaneseq
        %v1668 = vshrl.u32 %v1667, 7
        %v1669 = vsub.s32 %v1666, %v1668
        %v1670 = vrot.slane %v1656, %v1669
        %v1671 = vcombine.low %v1506, %v1652
        %v1672 = vcombine.high %v1506, %v1652
        %v1674 = vunpack.c.l.s4 1983009808
        %v1675 = vunpack.c.0.s8 %v1674
        %v1676 = vlaneseq
        %v1677 = vshrl.u32 %v1676, 7
        %v1678 = vsub.s32 %v1675, %v1677
        %v1679 = vrot.slane %v1671, %v1678
        %v1681 = vunpack.c.l.s4 1983009808
        %v1682 = vunpack.c.0.s8 %v1681
        %v1683 = vlaneseq
        %v1684 = vshrl.u32 %v1683, 7
        %v1685 = vsub.s32 %v1682, %v1684
        %v1686 = vrot.slane %v1672, %v1685
        %v1687 = vcombine.low %v1663, %v1679
        %v1688 = vcombine.high %v1663, %v1679
        %v1690 = vunpack.c.l.s4 1934713408
        %v1691 = vunpack.c.0.s8 %v1690
        %v1692 = vlaneseq
        %v1693 = vshrl.u32 %v1692, 7
        %v1694 = vsub.s32 %v1691, %v1693
        %v1695 = vrot.slane %v1687, %v1694
        %v1697 = vunpack.c.l.s4 1934713408
        %v1698 = vunpack.c.0.s8 %v1697
        %v1699 = vlaneseq
        %v1700 = vshrl.u32 %v1699, 7
        %v1701 = vsub.s32 %v1698, %v1700
        %v1702 = vrot.slane %v1688, %v1701
        %v1703 = vcombine.low %v1670, %v1686
        %v1704 = vcombine.high %v1670, %v1686
        %v1706 = vunpack.c.l.s4 1934713408
        %v1707 = vunpack.c.0.s8 %v1706
        %v1708 = vlaneseq
        %v1709 = vshrl.u32 %v1708, 7
        %v1710 = vsub.s32 %v1707, %v1709
        %v1711 = vrot.slane %v1703, %v1710
        %v1713 = vunpack.c.l.s4 1934713408
        %v1714 = vunpack.c.0.s8 %v1713
        %v1715 = vlaneseq
        %v1716 = vshrl.u32 %v1715, 7
        %v1717 = vsub.s32 %v1714, %v1716
        %v1718 = vrot.slane %v1704, %v1717
        %v1719 = vcombine.high %v1695, 0.0
        %v1720 = vcombine.high %v1702, 0.0
        %v1721 = vcombine.high %v1711, 0.0
        %v1722 = vcombine.high %v1718, 0.0
        %v1723 = vcombine.low %v1695, %v1702
        %v1725 = vunpack.c.l.s4 1983009808
        %v1726 = vunpack.c.0.s8 %v1725
        %v1727 = vlaneseq
        %v1728 = vshrl.u32 %v1727, 7
        %v1729 = vsub.s32 %v1726, %v1728
        %v1730 = vrot.slane %v1723, %v1729
        %v1731 = vcombine.low %v1719, %v1720
        %v1733 = vunpack.c.l.s4 1983009808
        %v1734 = vunpack.c.0.s8 %v1733
        %v1735 = vlaneseq
        %v1736 = vshrl.u32 %v1735, 7
        %v1737 = vsub.s32 %v1734, %v1736
        %v1738 = vrot.slane %v1731, %v1737
        %v1739 = vcombine.low %v1711, %v1718
        %v1741 = vunpack.c.l.s4 1983009808
        %v1742 = vunpack.c.0.s8 %v1741
        %v1743 = vlaneseq
        %v1744 = vshrl.u32 %v1743, 7
        %v1745 = vsub.s32 %v1742, %v1744
        %v1746 = vrot.slane %v1739, %v1745
        %v1747 = vcombine.low %v1721, %v1722
        %v1749 = vunpack.c.l.s4 1983009808
        %v1750 = vunpack.c.0.s8 %v1749
        %v1751 = vlaneseq
        %v1752 = vshrl.u32 %v1751, 7
        %v1753 = vsub.s32 %v1750, %v1752
        %v1754 = vrot.slane %v1747, %v1753
        %v1755 = vcombine.low %v1730, %v1738
        %v1756 = vcombine.high %v1730, %v1738
        %v1758 = vunpack.c.l.s4 1934713408
        %v1759 = vunpack.c.0.s8 %v1758
        %v1760 = vlaneseq
        %v1761 = vshrl.u32 %v1760, 7
        %v1762 = vsub.s32 %v1759, %v1761
        %v1763 = vrot.slane %v1755, %v1762
        %v1765 = vunpack.c.l.s4 1934713408
        %v1766 = vunpack.c.0.s8 %v1765
        %v1767 = vlaneseq
        %v1768 = vshrl.u32 %v1767, 7
        %v1769 = vsub.s32 %v1766, %v1768
        %v1770 = vrot.slane %v1756, %v1769
        %v1771 = vcombine.low %v1746, %v1754
        %v1772 = vcombine.high %v1746, %v1754
        %v1774 = vunpack.c.l.s4 1934713408
        %v1775 = vunpack.c.0.s8 %v1774
        %v1776 = vlaneseq
        %v1777 = vshrl.u32 %v1776, 7
        %v1778 = vsub.s32 %v1775, %v1777
        %v1779 = vrot.slane %v1771, %v1778
        %v1781 = vunpack.c.l.s4 1934713408
        %v1782 = vunpack.c.0.s8 %v1781
        %v1783 = vlaneseq
        %v1784 = vshrl.u32 %v1783, 7
        %v1785 = vsub.s32 %v1782, %v1784
        %v1786 = vrot.slane %v1772, %v1785
        %v1787 = vcombine.low %v1763, %v1779
        %v1788 = vcombine.high %v1763, %v1779
        %v1789 = vcombine.low %v1770, %v1786
        %v1790 = vcombine.high %v1770, %v1786
        %1792 = vrot.lane.b32.xlu0 %v1788, 8
        %v1793 = vpop.permute.xlu0 %1792
        %1796 = vrot.lane.b32.xlu0 %v1789, 16
        %v1797 = vpop.permute.xlu0 %1796
        %1800 = vrot.lane.b32.xlu0 %v1790, 24
        %v1801 = vpop.permute.xlu0 %1800
        %v1803 = vsel %vm1014, %v1787, %v1793
        %vm1804 = vcmask 130048
        %v1805 = vsel %vm1804, %v1803, %v1797
        %vm1806 = vcmask 195584
        %v1807 = vsel %vm1806, %v1805, %v1801
        %1808 = vst.msk [vmem:[%s325] sm:$0xff] %vm338, %v1807
        %s1809 = sand.u32 %s154, 1
        %s1810 = scalar_lea.sflag [#allocation4], %s1809
        %s1811 = sand.u32 %s154, 1
        %s1812 = smul.addr %s1811, 8
        %s1813 = scalar_lea.vmem [#allocation10], %s1812
        // Predicated region
        $region57: #{tpu_custom_call.1} parent=39 // pred_check
          %p1814 = pneg %p164
        $region58: #{tpu_custom_call.1} parent=39 // pred_check_branch
          %1816 = sbr.rel (%p1814) target = $region60
        $region59: #{tpu_custom_call.1} parent=39 // pred_region
          %s1818 = ssub.s32 128, 128
          %1819 = vsyncadd %s1810, %s1818
          %s1820 = smul.addr %s26, 128
          %s1821 = scalar_lea.hbm %s5, %s1820
          %s1823 = sshll.u32 %s1813, 4
          %s1824 = int_to_ptr.vmem [resolvable:$true] %s1823
          %1826 = dma.vmem_to_hbm [thread:$0]  %s1824, 128, %s1821, %s1810
        $region60: #{tpu_custom_call.1} parent=39 // pred_fallthru
          _
      $region40: #{tpu_custom_call.1} parent=5 // pred_fallthru
        _
      %p1827 = scmp.le.s32.totalorder 2, %s21
      // Predicated region
      $region61: #{tpu_custom_call.1} parent=5 // pred_check
        %p1828 = pneg %p1827
      $region62: #{tpu_custom_call.1} parent=5 // pred_check_branch
        %1830 = sbr.rel (%p1828) target = $region64
      $region63: #{tpu_custom_call.1} parent=5 // pred_region
        %s1831 = ssub.s32 %s21, 2
        // Predicated region
        $region65: #{tpu_custom_call.1} parent=63 // pred_check
          %p1832 = pneg %p170
        $region66: #{tpu_custom_call.1} parent=63 // pred_check_branch
          %1834 = sbr.rel (%p1832) target = $region68
        $region67: #{tpu_custom_call.1} parent=63 // pred_region
          %s1835 = sand.u32 %s155, 1
          %s1836 = scalar_lea.sflag [#allocation4], %s1835
          %s1837 = sand.u32 %s155, 1
          %s1838 = smul.addr %s1837, 8
          %s1839 = scalar_lea.vmem [#allocation10], %s1838
          %1840 = dma.done %s1836, 128
        $region68: #{tpu_custom_call.1} parent=63 // pred_fallthru
          _
      $region64: #{tpu_custom_call.1} parent=5 // pred_fallthru
        _
    $region6: #{tpu_custom_call.1} parent=1 // loop_footer
      %s25 = sadd.s32 1, %s21
    $region7: #{tpu_custom_call.1} parent=1 // loop_footer_branch
      %20 = sbr.rel target = $region3
    $region8: #{tpu_custom_call.1} parent=1 // loop_exit
      _
    %1841 = vsyncpa [#allocation3], 1
    %s1842 = scalar_lea.sflag [#allocation3], 1
    %1843 = vsyncpa %s1842, 1
    %1844 = vsyncpa [#allocation6], 1
    %s1845 = scalar_lea.sflag [#allocation6], 1
    %1846 = vsyncpa %s1845, 1
    %1847 = vsyncpa [#allocation9], 1
    %1848 = vsyncpa [#allocation4], 1
    %s1849 = scalar_lea.sflag [#allocation4], 1
    %1850 = vsyncpa %s1849, 1

</llo_original>
